<compile_context>
chip_gen: v7x
topology: tpu7x:2x2x1
jax: 0.10.0
libtpu: 0.0.40
codegen_flags: <defaults>
</compile_context>

<pallas_src>
import math

import jax
import jax.numpy as jnp
from jax.experimental import pallas as pl
from jax.experimental.pallas import tpu as pltpu


def _round_up(x, m):
    return (x + m - 1) // m * m


# -----------------------------------------------------------------------------
# Kernel factory
# -----------------------------------------------------------------------------
def make_critic_kernel(n_state_layers, n_merge_layers, action_size, compute_dtype):
    """Fused Critic MLP over one (features, TILE_M) slab of the batch.

    Ref ordering (inputs, all 2-D):
      states_t  (S, TILE_M)                       -- streamed per grid step
      actions_t (A, TILE_M)                       -- streamed per grid step
      [W_s_i (H_i, in_i), b_s_i (H_i, 1)] * n_state_layers        -- resident
      Wm0_x (H0, H_last), Wm0_a (H0, A), b_m0 (H0, 1)             -- resident
      [W_m_i, b_m_i] * (n_merge_layers - 1)                        -- resident
      w_final (H_lastM, 1), b_final (1, 1)                         -- resident
    followed by the single output ref (1, TILE_M).
    """

    def dense(h, w_ref, b_ref):
        # MXU matmul (optionally bf16 operands), f32 accumulate, f32 bias add.
        w = w_ref[...]
        y = jnp.dot(w, h.astype(w.dtype), preferred_element_type=jnp.float32)
        return y + b_ref[...]          # (out, 1) broadcast along lanes

    def kernel(*refs):
        idx = 0
        x = refs[idx][...]; idx += 1   # (S, T) f32
        a = refs[idx][...]; idx += 1   # (A, T) f32

        # state MLP: x = relu(W x + b)
        for _ in range(n_state_layers):
            x = jnp.maximum(dense(x, refs[idx], refs[idx + 1]), 0.0)
            idx += 2

        # first merge layer == W @ concat(x, actions) + b with W split column-
        # wise, so no concat is needed.  The actions part has K=action_size
        # (tiny): do it on the VPU as rank-1 updates instead of an MXU pass.
        wx_ref = refs[idx]; wa_ref = refs[idx + 1]; bm_ref = refs[idx + 2]
        idx += 3
        wx = wx_ref[...]
        z = jnp.dot(wx, x.astype(wx.dtype), preferred_element_type=jnp.float32)
        wa = wa_ref[...]               # (H0, A) f32
        if action_size <= 8:
            for j in range(action_size):
                z = z + wa[:, j:j + 1] * a[j:j + 1, :]
        else:
            z = z + jnp.dot(wa.astype(compute_dtype), a.astype(compute_dtype),
                            preferred_element_type=jnp.float32)
        z = jnp.maximum(z + bm_ref[...], 0.0)

        # remaining merge layers
        for _ in range(n_merge_layers - 1):
            z = jnp.maximum(dense(z, refs[idx], refs[idx + 1]), 0.0)
            idx += 2

        # final H -> 1 layer: VPU multiply + sublane reduce; result is already
        # lane-dense, so the store is a full-width unmasked vst.
        wf = refs[idx][...]            # (H, 1) f32
        bf = refs[idx + 1][...]        # (1, 1) f32
        idx += 2
        out_ref = refs[idx]
        out_ref[...] = jnp.sum(z * wf, axis=0, keepdims=True) + bf

    return kernel


# -----------------------------------------------------------------------------
# Tile sizing / VMEM budgeting (conservative for v7x's 64 MiB VMEM)
# -----------------------------------------------------------------------------
def _choose_tile_m(M, state_size, action_size, hidden_max,
                   vmem_budget_bytes=20 * 2**20):
    tile = 512                                     # start at 256-512 per review

    def per_tile_bytes(t):
        streamed = 2 * t * (state_size + action_size + 1) * 4   # dbl-buffered i/o
        live = 6 * t * hidden_max * 4                            # f32 temporaries
        return streamed + live

    while tile > 128 and per_tile_bytes(tile) > vmem_budget_bytes:
        tile //= 2
    # don't over-pad tiny batches, but stay a multiple of 128 for lane density
    return min(tile, max(128, _round_up(M, 128)))


# -----------------------------------------------------------------------------
# Parameter init (mimics nn.Linear default: U(-1/sqrt(fan_in), 1/sqrt(fan_in)))
# Weights are stored PyTorch-style [out_features, in_features]; biases (out, 1).
# -----------------------------------------------------------------------------
def init_linear(key, fan_in, fan_out):
    kw, kb = jax.random.split(key)
    bound = 1.0 / math.sqrt(fan_in)
    w = jax.random.uniform(kw, (fan_out, fan_in), jnp.float32, -bound, bound)
    b = jax.random.uniform(kb, (fan_out, 1), jnp.float32, -bound, bound)
    return w, b


def init_critic_params(key, state_size, action_size, mlp_specs):
    params = {"state": [], "merge": []}
    in_node = state_size
    for spec in mlp_specs:
        key, sub = jax.random.split(key)
        params["state"].append(init_linear(sub, in_node, spec))
        in_node = spec
    in_node = mlp_specs[-1] + action_size
    for spec in mlp_specs:
        key, sub = jax.random.split(key)
        params["merge"].append(init_linear(sub, in_node, spec))
        in_node = spec
    key, sub = jax.random.split(key)
    params["final"] = init_linear(sub, mlp_specs[-1], 1)
    return params


# -----------------------------------------------------------------------------
# Wrapper
# -----------------------------------------------------------------------------
def critic_forward(params, states, actions, *, compute_dtype=jnp.float32,
                   interpret=False):
    """states: (B, N, state_size), actions: (B, N, action_size) -> squeeze(B, N)"""
    B, N, S = states.shape
    A = actions.shape[-1]
    M = B * N

    n_state = len(params["state"])
    n_merge = len(params["merge"])
    hidden = [w.shape[0] for (w, _) in params["state"]] + \
             [w.shape[0] for (w, _) in params["merge"]]
    h_last_state = params["state"][-1][0].shape[0]
    w_m0, b_m0 = params["merge"][0]
    assert w_m0.shape[1] == h_last_state + A, (
        "merge[0] fan_in must equal mlp_specs[-1] + action_size")

    # ---- tile the batch dimension (lane axis) -------------------------------
    tile_m = _choose_tile_m(M, S, A, max(hidden))
    m_pad = _round_up(max(M, tile_m), tile_m)
    grid = (m_pad // tile_m,)

    states2d = states.reshape(M, S).astype(jnp.float32)
    actions2d = actions.reshape(M, A).astype(jnp.float32)
    if m_pad != M:
        states2d = jnp.pad(states2d, ((0, m_pad - M), (0, 0)))
        actions2d = jnp.pad(actions2d, ((0, m_pad - M), (0, 0)))
    # feature-major ("transposed") layout: batch rows live on the lane axis
    states_t = states2d.T      # (S, m_pad)
    actions_t = actions2d.T    # (A, m_pad)

    # ---- flatten parameters in the order the kernel expects -----------------
    inputs = [states_t, actions_t]
    specs = [pl.BlockSpec((S, tile_m), lambda i: (0, i)),
             pl.BlockSpec((A, tile_m), lambda i: (0, i))]

    def add_resident(arr):
        inputs.append(arr)
        specs.append(pl.BlockSpec(arr.shape, lambda i: (0, 0)))

    def mxu_w(w):                       # bf16 weights halve resident DMA bytes
        return w.astype(compute_dtype)

    for (w, b) in params["state"]:
        add_resident(mxu_w(w)); add_resident(b)
    add_resident(mxu_w(w_m0[:, :h_last_state]))   # state part  -> MXU
    add_resident(w_m0[:, h_last_state:])          # action part -> VPU (f32)
    add_resident(b_m0)
    for (w, b) in params["merge"][1:]:
        add_resident(mxu_w(w)); add_resident(b)
    wf, bf = params["final"]                      # (1, H), (1, 1)
    add_resident(wf.T)                            # (H, 1) f32 for VPU reduce
    add_resident(bf)

    # ---- explicit VMEM limit (resident weights + double-buffered streams) ---
    resident_bytes = sum(int(x.size) * x.dtype.itemsize for x in inputs[2:])
    streamed_bytes = (S + A + 1) * tile_m * 4
    live_bytes = 6 * tile_m * max(hidden) * 4
    est = 2 * (resident_bytes + streamed_bytes) + live_bytes
    vmem_limit = int(min(64 * 2**20, max(16 * 2**20, 2 * est)))

    kernel = make_critic_kernel(n_state, n_merge, A, compute_dtype)
    out = pl.pallas_call(
        kernel,
        grid=grid,
        in_specs=specs,
        out_specs=pl.BlockSpec((1, tile_m), lambda i: (0, i)),
        out_shape=jax.ShapeDtypeStruct((1, m_pad), jnp.float32),
        compiler_params=pltpu.CompilerParams(
            dimension_semantics=("parallel",),      # v7x: shard rows over 2 TCs
            vmem_limit_bytes=vmem_limit),
        interpret=interpret,
    )(*inputs)

    out_bn = out[0, :M].reshape(B, N)
    return jnp.squeeze(out_bn)   # matches torch's .squeeze() (drops size-1 dims)


# Pure-JAX reference for correctness check (PyTorch [out, in] weight layout)
def critic_forward_ref(params, states, actions):
    x = states.astype(jnp.float32)
    for (w, b) in params["state"]:
        x = jax.nn.relu(x @ w.T + b[:, 0])
    z = jnp.concatenate([x, actions.astype(jnp.float32)], axis=-1)
    for (w, b) in params["merge"]:
        z = jax.nn.relu(z @ w.T + b[:, 0])
    wf, bf = params["final"]
    return jnp.squeeze(z @ wf.T + bf[:, 0])


# -----------------------------------------------------------------------------
# Main
# -----------------------------------------------------------------------------
if __name__ == "__main__":
    batch_size = 2
    num_agents = 3
    state_size = 24
    action_size = 2
    # hidden widths chosen as multiples of 128 so activations/weights are
    # lane-dense (perf-review item); the kernel handles arbitrary widths.
    mlp_specs = (128, 128)

    key = jax.random.PRNGKey(0)
    k_params, k_states, k_actions = jax.random.split(key, 3)

    params = init_critic_params(k_params, state_size, action_size, mlp_specs)
    states = jax.random.normal(
        k_states, (batch_size, num_agents, state_size), jnp.float32)
    actions = jax.random.normal(
        k_actions, (batch_size, num_agents, action_size), jnp.float32)

    ref = critic_forward_ref(params, states, actions)

    # f32 MXU path (bit-faithful to the PyTorch module; v5e-friendly)
    out_f32 = jax.block_until_ready(
        critic_forward(params, states, actions, compute_dtype=jnp.float32))
    assert out_f32.shape == (batch_size, num_agents)
    assert jnp.allclose(out_f32, ref, atol=1e-4, rtol=1e-4)

    # bf16-operand MXU path (v6e/v7x fast path; f32 accumulate, f32 epilogue)
    out_bf16 = jax.block_until_ready(
        critic_forward(params, states, actions, compute_dtype=jnp.bfloat16))
    assert out_bf16.shape == (batch_size, num_agents)
    assert jnp.allclose(out_bf16, ref, atol=1e-1, rtol=5e-2)

    print("KERNEL_OK")
</pallas_src>

<mosaic_0001>
module attributes {stable_mosaic.version = 11 : i64} {
  func.func @kernel(%arg0: i32, %arg1: memref<24x128xf32, #tpu.memory_space<vmem>>, %arg2: memref<2x128xf32, #tpu.memory_space<vmem>>, %arg3: memref<128x24xf32, #tpu.memory_space<vmem>>, %arg4: memref<128x1xf32, #tpu.memory_space<vmem>>, %arg5: memref<128x128xf32, #tpu.memory_space<vmem>>, %arg6: memref<128x1xf32, #tpu.memory_space<vmem>>, %arg7: memref<128x128xf32, #tpu.memory_space<vmem>>, %arg8: memref<128x2xf32, #tpu.memory_space<vmem>>, %arg9: memref<128x1xf32, #tpu.memory_space<vmem>>, %arg10: memref<128x128xf32, #tpu.memory_space<vmem>>, %arg11: memref<128x1xf32, #tpu.memory_space<vmem>>, %arg12: memref<128x1xf32, #tpu.memory_space<vmem>>, %arg13: memref<1x1xf32, #tpu.memory_space<vmem>>, %arg14: memref<1x128xf32, #tpu.memory_space<vmem>>) attributes {dimension_semantics = [#tpu.dimension_semantics<parallel>], iteration_bounds = array<i64: 1>, scalar_prefetch = 0 : i64, scratch_operands = 0 : i64, tpu.core_type = #tpu.core_type<tc>, window_params = [{transform_indices = @transform_0, window_bounds = array<i64: 24, 128>}, {transform_indices = @transform_1, window_bounds = array<i64: 2, 128>}, {pipeline_mode = #tpu.pipeline_mode<synchronous>, transform_indices = @transform_2, window_bounds = array<i64: 128, 24>}, {pipeline_mode = #tpu.pipeline_mode<synchronous>, transform_indices = @transform_3, window_bounds = array<i64: 128, 1>}, {pipeline_mode = #tpu.pipeline_mode<synchronous>, transform_indices = @transform_4, window_bounds = array<i64: 128, 128>}, {pipeline_mode = #tpu.pipeline_mode<synchronous>, transform_indices = @transform_5, window_bounds = array<i64: 128, 1>}, {pipeline_mode = #tpu.pipeline_mode<synchronous>, transform_indices = @transform_6, window_bounds = array<i64: 128, 128>}, {pipeline_mode = #tpu.pipeline_mode<synchronous>, transform_indices = @transform_7, window_bounds = array<i64: 128, 2>}, {pipeline_mode = #tpu.pipeline_mode<synchronous>, transform_indices = @transform_8, window_bounds = array<i64: 128, 1>}, {pipeline_mode = #tpu.pipeline_mode<synchronous>, transform_indices = @transform_9, window_bounds = array<i64: 128, 128>}, {pipeline_mode = #tpu.pipeline_mode<synchronous>, transform_indices = @transform_10, window_bounds = array<i64: 128, 1>}, {pipeline_mode = #tpu.pipeline_mode<synchronous>, transform_indices = @transform_11, window_bounds = array<i64: 128, 1>}, {pipeline_mode = #tpu.pipeline_mode<synchronous>, transform_indices = @transform_12, window_bounds = array<i64: 1, 1>}, {transform_indices = @transform_13, window_bounds = array<i64: 1, 128>}]} {
    %c0 = arith.constant 0 : index
    %c0_0 = arith.constant 0 : index
    %0 = vector.load %arg1[%c0, %c0_0] : memref<24x128xf32, #tpu.memory_space<vmem>>, vector<24x128xf32>
    %c0_1 = arith.constant 0 : index
    %c0_2 = arith.constant 0 : index
    %1 = vector.load %arg2[%c0_1, %c0_2] : memref<2x128xf32, #tpu.memory_space<vmem>>, vector<2x128xf32>
    %c0_3 = arith.constant 0 : index
    %c0_4 = arith.constant 0 : index
    %2 = vector.load %arg3[%c0_3, %c0_4] : memref<128x24xf32, #tpu.memory_space<vmem>>, vector<128x24xf32>
    %cst = arith.constant dense<0.000000e+00> : vector<128x128xf32>
    %3 = tpu.matmul %2, %0, %cst {dimension_numbers = #tpu.dot_dimension_numbers<[1], [0], [0], [1], [0, 0, 1, 1], [], []>} : vector<128x24xf32>, vector<24x128xf32>, vector<128x128xf32> -> vector<128x128xf32>
    %c0_5 = arith.constant 0 : index
    %c0_6 = arith.constant 0 : index
    %4 = vector.load %arg4[%c0_5, %c0_6] : memref<128x1xf32, #tpu.memory_space<vmem>>, vector<128x1xf32>
    %5 = vector.broadcast %4 : vector<128x1xf32> to vector<128x128xf32>
    %6 = arith.addf %3, %5 : vector<128x128xf32>
    %cst_7 = arith.constant 0.000000e+00 : f32
    %7 = vector.broadcast %cst_7 : f32 to vector<128x128xf32>
    %8 = arith.maximumf %6, %7 : vector<128x128xf32>
    %c0_8 = arith.constant 0 : index
    %c0_9 = arith.constant 0 : index
    %9 = vector.load %arg5[%c0_8, %c0_9] : memref<128x128xf32, #tpu.memory_space<vmem>>, vector<128x128xf32>
    %cst_10 = arith.constant dense<0.000000e+00> : vector<128x128xf32>
    %10 = tpu.matmul %9, %8, %cst_10 {dimension_numbers = #tpu.dot_dimension_numbers<[1], [0], [0], [1], [0, 0, 1, 1], [], []>} : vector<128x128xf32>, vector<128x128xf32>, vector<128x128xf32> -> vector<128x128xf32>
    %c0_11 = arith.constant 0 : index
    %c0_12 = arith.constant 0 : index
    %11 = vector.load %arg6[%c0_11, %c0_12] : memref<128x1xf32, #tpu.memory_space<vmem>>, vector<128x1xf32>
    %12 = vector.broadcast %11 : vector<128x1xf32> to vector<128x128xf32>
    %13 = arith.addf %10, %12 : vector<128x128xf32>
    %cst_13 = arith.constant 0.000000e+00 : f32
    %14 = vector.broadcast %cst_13 : f32 to vector<128x128xf32>
    %15 = arith.maximumf %13, %14 : vector<128x128xf32>
    %c0_14 = arith.constant 0 : index
    %c0_15 = arith.constant 0 : index
    %16 = vector.load %arg7[%c0_14, %c0_15] : memref<128x128xf32, #tpu.memory_space<vmem>>, vector<128x128xf32>
    %cst_16 = arith.constant dense<0.000000e+00> : vector<128x128xf32>
    %17 = tpu.matmul %16, %15, %cst_16 {dimension_numbers = #tpu.dot_dimension_numbers<[1], [0], [0], [1], [0, 0, 1, 1], [], []>} : vector<128x128xf32>, vector<128x128xf32>, vector<128x128xf32> -> vector<128x128xf32>
    %c0_17 = arith.constant 0 : index
    %c0_18 = arith.constant 0 : index
    %18 = vector.load %arg8[%c0_17, %c0_18] : memref<128x2xf32, #tpu.memory_space<vmem>>, vector<128x2xf32>
    %19 = vector.extract_strided_slice %18 {offsets = [0, 0], sizes = [128, 1], strides = [1, 1]} : vector<128x2xf32> to vector<128x1xf32>
    %20 = vector.extract_strided_slice %1 {offsets = [0, 0], sizes = [1, 128], strides = [1, 1]} : vector<2x128xf32> to vector<1x128xf32>
    %21 = vector.broadcast %19 : vector<128x1xf32> to vector<128x128xf32>
    %22 = vector.broadcast %20 : vector<1x128xf32> to vector<128x128xf32>
    %23 = arith.mulf %21, %22 : vector<128x128xf32>
    %24 = arith.addf %17, %23 : vector<128x128xf32>
    %25 = vector.extract_strided_slice %18 {offsets = [0, 1], sizes = [128, 1], strides = [1, 1]} : vector<128x2xf32> to vector<128x1xf32>
    %26 = vector.extract_strided_slice %1 {offsets = [1, 0], sizes = [1, 128], strides = [1, 1]} : vector<2x128xf32> to vector<1x128xf32>
    %27 = vector.broadcast %25 : vector<128x1xf32> to vector<128x128xf32>
    %28 = vector.broadcast %26 : vector<1x128xf32> to vector<128x128xf32>
    %29 = arith.mulf %27, %28 : vector<128x128xf32>
    %30 = arith.addf %24, %29 : vector<128x128xf32>
    %c0_19 = arith.constant 0 : index
    %c0_20 = arith.constant 0 : index
    %31 = vector.load %arg9[%c0_19, %c0_20] : memref<128x1xf32, #tpu.memory_space<vmem>>, vector<128x1xf32>
    %32 = vector.broadcast %31 : vector<128x1xf32> to vector<128x128xf32>
    %33 = arith.addf %30, %32 : vector<128x128xf32>
    %cst_21 = arith.constant 0.000000e+00 : f32
    %34 = vector.broadcast %cst_21 : f32 to vector<128x128xf32>
    %35 = arith.maximumf %33, %34 : vector<128x128xf32>
    %c0_22 = arith.constant 0 : index
    %c0_23 = arith.constant 0 : index
    %36 = vector.load %arg10[%c0_22, %c0_23] : memref<128x128xf32, #tpu.memory_space<vmem>>, vector<128x128xf32>
    %cst_24 = arith.constant dense<0.000000e+00> : vector<128x128xf32>
    %37 = tpu.matmul %36, %35, %cst_24 {dimension_numbers = #tpu.dot_dimension_numbers<[1], [0], [0], [1], [0, 0, 1, 1], [], []>} : vector<128x128xf32>, vector<128x128xf32>, vector<128x128xf32> -> vector<128x128xf32>
    %c0_25 = arith.constant 0 : index
    %c0_26 = arith.constant 0 : index
    %38 = vector.load %arg11[%c0_25, %c0_26] : memref<128x1xf32, #tpu.memory_space<vmem>>, vector<128x1xf32>
    %39 = vector.broadcast %38 : vector<128x1xf32> to vector<128x128xf32>
    %40 = arith.addf %37, %39 : vector<128x128xf32>
    %cst_27 = arith.constant 0.000000e+00 : f32
    %41 = vector.broadcast %cst_27 : f32 to vector<128x128xf32>
    %42 = arith.maximumf %40, %41 : vector<128x128xf32>
    %c0_28 = arith.constant 0 : index
    %c0_29 = arith.constant 0 : index
    %43 = vector.load %arg12[%c0_28, %c0_29] : memref<128x1xf32, #tpu.memory_space<vmem>>, vector<128x1xf32>
    %c0_30 = arith.constant 0 : index
    %c0_31 = arith.constant 0 : index
    %44 = vector.load %arg13[%c0_30, %c0_31] : memref<1x1xf32, #tpu.memory_space<vmem>>, vector<1x1xf32>
    %45 = vector.broadcast %43 : vector<128x1xf32> to vector<128x128xf32>
    %46 = arith.mulf %42, %45 : vector<128x128xf32>
    %cst_32 = arith.constant dense<0.000000e+00> : vector<128xf32>
    %47 = vector.multi_reduction <add>, %46, %cst_32 [0] : vector<128x128xf32> to vector<128xf32>
    %48 = vector.shape_cast %47 : vector<128xf32> to vector<1x128xf32>
    %49 = vector.broadcast %44 : vector<1x1xf32> to vector<1x128xf32>
    %50 = arith.addf %48, %49 : vector<1x128xf32>
    %c0_33 = arith.constant 0 : index
    %c0_34 = arith.constant 0 : index
    %51 = vector.load %arg14[%c0_33, %c0_34] : memref<1x128xf32, #tpu.memory_space<vmem>>, vector<1x128xf32>
    tpu.vector_store %arg14[%c0_33, %c0_34], %50 {strides = array<i32>} : memref<1x128xf32, #tpu.memory_space<vmem>>, vector<1x128xf32>,
    return
  }
  func.func @transform_0(%arg0: i32) -> (i32, i32) {
    %c0_i32 = arith.constant 0 : i32
    %c0_i32_0 = arith.constant 0 : i32
    return %c0_i32, %arg0 : i32, i32
  }
  func.func @transform_1(%arg0: i32) -> (i32, i32) {
    %c0_i32 = arith.constant 0 : i32
    %c0_i32_0 = arith.constant 0 : i32
    return %c0_i32, %arg0 : i32, i32
  }
  func.func @transform_2(%arg0: i32) -> (i32, i32) {
    %c0_i32 = arith.constant 0 : i32
    %c0_i32_0 = arith.constant 0 : i32
    %c0_i32_1 = arith.constant 0 : i32
    return %c0_i32, %c0_i32_0 : i32, i32
  }
  func.func @transform_3(%arg0: i32) -> (i32, i32) {
    %c0_i32 = arith.constant 0 : i32
    %c0_i32_0 = arith.constant 0 : i32
    %c0_i32_1 = arith.constant 0 : i32
    return %c0_i32, %c0_i32_0 : i32, i32
  }
  func.func @transform_4(%arg0: i32) -> (i32, i32) {
    %c0_i32 = arith.constant 0 : i32
    %c0_i32_0 = arith.constant 0 : i32
    %c0_i32_1 = arith.constant 0 : i32
    return %c0_i32, %c0_i32_0 : i32, i32
  }
  func.func @transform_5(%arg0: i32) -> (i32, i32) {
    %c0_i32 = arith.constant 0 : i32
    %c0_i32_0 = arith.constant 0 : i32
    %c0_i32_1 = arith.constant 0 : i32
    return %c0_i32, %c0_i32_0 : i32, i32
  }
  func.func @transform_6(%arg0: i32) -> (i32, i32) {
    %c0_i32 = arith.constant 0 : i32
    %c0_i32_0 = arith.constant 0 : i32
    %c0_i32_1 = arith.constant 0 : i32
    return %c0_i32, %c0_i32_0 : i32, i32
  }
  func.func @transform_7(%arg0: i32) -> (i32, i32) {
    %c0_i32 = arith.constant 0 : i32
    %c0_i32_0 = arith.constant 0 : i32
    %c0_i32_1 = arith.constant 0 : i32
    return %c0_i32, %c0_i32_0 : i32, i32
  }
  func.func @transform_8(%arg0: i32) -> (i32, i32) {
    %c0_i32 = arith.constant 0 : i32
    %c0_i32_0 = arith.constant 0 : i32
    %c0_i32_1 = arith.constant 0 : i32
    return %c0_i32, %c0_i32_0 : i32, i32
  }
  func.func @transform_9(%arg0: i32) -> (i32, i32) {
    %c0_i32 = arith.constant 0 : i32
    %c0_i32_0 = arith.constant 0 : i32
    %c0_i32_1 = arith.constant 0 : i32
    return %c0_i32, %c0_i32_0 : i32, i32
  }
  func.func @transform_10(%arg0: i32) -> (i32, i32) {
    %c0_i32 = arith.constant 0 : i32
    %c0_i32_0 = arith.constant 0 : i32
    %c0_i32_1 = arith.constant 0 : i32
    return %c0_i32, %c0_i32_0 : i32, i32
  }
  func.func @transform_11(%arg0: i32) -> (i32, i32) {
    %c0_i32 = arith.constant 0 : i32
    %c0_i32_0 = arith.constant 0 : i32
    %c0_i32_1 = arith.constant 0 : i32
    return %c0_i32, %c0_i32_0 : i32, i32
  }
  func.func @transform_12(%arg0: i32) -> (i32, i32) {
    %c0_i32 = arith.constant 0 : i32
    %c0_i32_0 = arith.constant 0 : i32
    %c0_i32_1 = arith.constant 0 : i32
    return %c0_i32, %c0_i32_0 : i32, i32
  }
  func.func @transform_13(%arg0: i32) -> (i32, i32) {
    %c0_i32 = arith.constant 0 : i32
    %c0_i32_0 = arith.constant 0 : i32
    return %c0_i32, %arg0 : i32, i32
  }
}

</mosaic_0001>

<llo_original>
// kernel: tpu_custom_call.1
$region0: #{tpu_custom_call.1}
  #allocation0 [shape = 'u32[]', space=smem, size = 0x4, offset = 0x4, fixed_abs, tag = 'smem constant byte address 0x4 - core index']
  #allocation1 [shape = 'u32[144,128]{1,0:T(1,128)}', space=vmem, size = 0x12000, scoped, tag = 'internal scratch']
  #allocation2 [shape = 'f32[1,1]{1,0:T(1,128)S(1)}', space=vmem, size = 0x200, scoped, tag = 'scoped memory for tpu_custom_call.1']
  %s0 = inlined_call_operand.vmem [shape: f32[24,128], index: 0, kind: input, shape index: {}]
  %s1 = inlined_call_operand.vmem [shape: f32[2,128], index: 1, kind: input, shape index: {}]
  %s2 = inlined_call_operand.vmem [shape: f32[128,24], index: 2, kind: input, shape index: {}]
  %s3 = inlined_call_operand.vmem [shape: f32[128,1], index: 3, kind: input, shape index: {}]
  %s4 = inlined_call_operand.vmem [shape: f32[128,128], index: 4, kind: input, shape index: {}]
  %s5 = inlined_call_operand.vmem [shape: f32[128,1], index: 5, kind: input, shape index: {}]
  %s6 = inlined_call_operand.vmem [shape: f32[128,128], index: 6, kind: input, shape index: {}]
  %s7 = inlined_call_operand.vmem [shape: f32[128,2], index: 7, kind: input, shape index: {}]
  %s8 = inlined_call_operand.vmem [shape: f32[128,1], index: 8, kind: input, shape index: {}]
  %s9 = inlined_call_operand.vmem [shape: f32[128,128], index: 9, kind: input, shape index: {}]
  %s10 = inlined_call_operand.vmem [shape: f32[128,1], index: 10, kind: input, shape index: {}]
  %s11 = inlined_call_operand.vmem [shape: f32[128,1], index: 11, kind: input, shape index: {}]
  %s12 = inlined_call_operand.<no memory space> [shape: f32[1,1], index: 12, kind: input, shape index: {}]
  %s13 = inlined_call_operand.hbm [shape: f32[1,128], index: 13, kind: output, shape index: {}]
  %s14 = sld [smem:[#allocation0]]
  $region62: #{tpu_custom_call.1} parent=0
    _
  %s16 = ssub.s32 1, %s14
  %s17 = scalar_select 0, %s16, %s14
  %v18 = vstv %s12
  %19 = vst [vmem:[#allocation2] sm:$0x1] %v18
  $region1: #{tpu_custom_call.1} parent=0
    #allocation3 [shape = 'u8[512]{0}', space=vmem, size = 0x400, scoped, tag = 'output window, operand 0, single buffered']
    #allocation4 [shape = 's32[1]{0}', space=sflag, size = 0x4, scoped, tag = 'scoped memory for tpu_custom_call.1']
    %20 = vsyncpa [#allocation4], 0
    // Predicated region
    $region2: #{tpu_custom_call.1} parent=1 // pred_check
      _
    $region3: #{tpu_custom_call.1} parent=1 // pred_check_branch
      %22 = sbr.rel (0) target = $region5
    $region4: #{tpu_custom_call.1} parent=1 // pred_region
      _
    $region5: #{tpu_custom_call.1} parent=1 // pred_fallthru
      _
    // Predicated region
    $region6: #{tpu_custom_call.1} parent=1 // pred_check
      _
    $region7: #{tpu_custom_call.1} parent=1 // pred_check_branch
      %24 = sbr.rel (0) target = $region9
    $region8: #{tpu_custom_call.1} parent=1 // pred_region
      _
    $region9: #{tpu_custom_call.1} parent=1 // pred_fallthru
      _
    // Predicated region
    $region10: #{tpu_custom_call.1} parent=1 // pred_check
      _
    $region11: #{tpu_custom_call.1} parent=1 // pred_check_branch
      %26 = sbr.rel (0) target = $region13
    $region12: #{tpu_custom_call.1} parent=1 // pred_region
      _
    $region13: #{tpu_custom_call.1} parent=1 // pred_fallthru
      _
    // Predicated region
    $region14: #{tpu_custom_call.1} parent=1 // pred_check
      _
    $region15: #{tpu_custom_call.1} parent=1 // pred_check_branch
      %28 = sbr.rel (0) target = $region17
    $region16: #{tpu_custom_call.1} parent=1 // pred_region
      _
    $region17: #{tpu_custom_call.1} parent=1 // pred_fallthru
      _
    // Predicated region
    $region18: #{tpu_custom_call.1} parent=1 // pred_check
      _
    $region19: #{tpu_custom_call.1} parent=1 // pred_check_branch
      %30 = sbr.rel (0) target = $region21
    $region20: #{tpu_custom_call.1} parent=1 // pred_region
      _
    $region21: #{tpu_custom_call.1} parent=1 // pred_fallthru
      _
    // Predicated region
    $region22: #{tpu_custom_call.1} parent=1 // pred_check
      _
    $region23: #{tpu_custom_call.1} parent=1 // pred_check_branch
      %32 = sbr.rel (0) target = $region25
    $region24: #{tpu_custom_call.1} parent=1 // pred_region
      _
    $region25: #{tpu_custom_call.1} parent=1 // pred_fallthru
      _
    // Predicated region
    $region26: #{tpu_custom_call.1} parent=1 // pred_check
      _
    $region27: #{tpu_custom_call.1} parent=1 // pred_check_branch
      %34 = sbr.rel (0) target = $region29
    $region28: #{tpu_custom_call.1} parent=1 // pred_region
      _
    $region29: #{tpu_custom_call.1} parent=1 // pred_fallthru
      _
    // Predicated region
    $region30: #{tpu_custom_call.1} parent=1 // pred_check
      _
    $region31: #{tpu_custom_call.1} parent=1 // pred_check_branch
      %36 = sbr.rel (0) target = $region33
    $region32: #{tpu_custom_call.1} parent=1 // pred_region
      _
    $region33: #{tpu_custom_call.1} parent=1 // pred_fallthru
      _
    // Predicated region
    $region34: #{tpu_custom_call.1} parent=1 // pred_check
      _
    $region35: #{tpu_custom_call.1} parent=1 // pred_check_branch
      %38 = sbr.rel (0) target = $region37
    $region36: #{tpu_custom_call.1} parent=1 // pred_region
      _
    $region37: #{tpu_custom_call.1} parent=1 // pred_fallthru
      _
    // Predicated region
    $region38: #{tpu_custom_call.1} parent=1 // pred_check
      _
    $region39: #{tpu_custom_call.1} parent=1 // pred_check_branch
      %40 = sbr.rel (0) target = $region41
    $region40: #{tpu_custom_call.1} parent=1 // pred_region
      _
    $region41: #{tpu_custom_call.1} parent=1 // pred_fallthru
      _
    // Predicated region
    $region42: #{tpu_custom_call.1} parent=1 // pred_check
      _
    $region43: #{tpu_custom_call.1} parent=1 // pred_check_branch
      %42 = sbr.rel (0) target = $region45
    $region44: #{tpu_custom_call.1} parent=1 // pred_region
      _
    $region45: #{tpu_custom_call.1} parent=1 // pred_fallthru
      _
    // Predicated region
    $region46: #{tpu_custom_call.1} parent=1 // pred_check
      _
    $region47: #{tpu_custom_call.1} parent=1 // pred_check_branch
      %44 = sbr.rel (0) target = $region49
    $region48: #{tpu_custom_call.1} parent=1 // pred_region
      _
    $region49: #{tpu_custom_call.1} parent=1 // pred_fallthru
      _
    // Predicated region
    $region50: #{tpu_custom_call.1} parent=1 // pred_check
      _
    $region51: #{tpu_custom_call.1} parent=1 // pred_check_branch
      %46 = sbr.rel (0) target = $region53
    $region52: #{tpu_custom_call.1} parent=1 // pred_region
      _
    $region53: #{tpu_custom_call.1} parent=1 // pred_fallthru
      _
    %v47 = vld [vmem:[%s0] sm:$0xff]
    %v48 = vld [vmem:[%s0 + $0x8] sm:$0xff]
    %v49 = vld [vmem:[%s0 + $0x10] sm:$0xff]
    %v50 = vld [vmem:[%s1] sm:$0x3]
    %v51 = vld [vmem:[%s2] sm:$0xff]
    %v52 = vld [vmem:[%s2 + $0x8] sm:$0xff]
    %v53 = vld [vmem:[%s2 + $0x10] sm:$0xff]
    %v54 = vld [vmem:[%s2 + $0x18] sm:$0xff]
    %v55 = vld [vmem:[%s2 + $0x20] sm:$0xff]
    %v56 = vld [vmem:[%s2 + $0x28] sm:$0xff]
    %v57 = vld [vmem:[%s2 + $0x30] sm:$0xff]
    %v58 = vld [vmem:[%s2 + $0x38] sm:$0xff]
    %v59 = vld [vmem:[%s2 + $0x40] sm:$0xff]
    %v60 = vld [vmem:[%s2 + $0x48] sm:$0xff]
    %v61 = vld [vmem:[%s2 + $0x50] sm:$0xff]
    %v62 = vld [vmem:[%s2 + $0x58] sm:$0xff]
    %v63 = vld [vmem:[%s2 + $0x60] sm:$0xff]
    %v64 = vld [vmem:[%s2 + $0x68] sm:$0xff]
    %v65 = vld [vmem:[%s2 + $0x70] sm:$0xff]
    %v66 = vld [vmem:[%s2 + $0x78] sm:$0xff]
    %v67 = vld [vmem:[%s3] sm:$0xff]
    %v68 = vld [vmem:[%s3 + $0x8] sm:$0xff]
    %v69 = vld [vmem:[%s3 + $0x10] sm:$0xff]
    %v70 = vld [vmem:[%s3 + $0x18] sm:$0xff]
    %v71 = vld [vmem:[%s3 + $0x20] sm:$0xff]
    %v72 = vld [vmem:[%s3 + $0x28] sm:$0xff]
    %v73 = vld [vmem:[%s3 + $0x30] sm:$0xff]
    %v74 = vld [vmem:[%s3 + $0x38] sm:$0xff]
    %v75 = vld [vmem:[%s3 + $0x40] sm:$0xff]
    %v76 = vld [vmem:[%s3 + $0x48] sm:$0xff]
    %v77 = vld [vmem:[%s3 + $0x50] sm:$0xff]
    %v78 = vld [vmem:[%s3 + $0x58] sm:$0xff]
    %v79 = vld [vmem:[%s3 + $0x60] sm:$0xff]
    %v80 = vld [vmem:[%s3 + $0x68] sm:$0xff]
    %v81 = vld [vmem:[%s3 + $0x70] sm:$0xff]
    %v82 = vld [vmem:[%s3 + $0x78] sm:$0xff]
    %84 = vset.pattern.permute.xlu0 0
    %85 = vperm.xlu0 %84, %v67
    %v86 = vpop.permute.xlu0 %85
    %89 = vset.pattern.permute.xlu0 0
    %90 = vperm.xlu0 %89, %v68
    %v91 = vpop.permute.xlu0 %90
    %94 = vset.pattern.permute.xlu0 0
    %95 = vperm.xlu0 %94, %v69
    %v96 = vpop.permute.xlu0 %95
    %99 = vset.pattern.permute.xlu0 0
    %100 = vperm.xlu0 %99, %v70
    %v101 = vpop.permute.xlu0 %100
    %104 = vset.pattern.permute.xlu0 0
    %105 = vperm.xlu0 %104, %v71
    %v106 = vpop.permute.xlu0 %105
    %109 = vset.pattern.permute.xlu0 0
    %110 = vperm.xlu0 %109, %v72
    %v111 = vpop.permute.xlu0 %110
    %114 = vset.pattern.permute.xlu0 0
    %115 = vperm.xlu0 %114, %v73
    %v116 = vpop.permute.xlu0 %115
    %119 = vset.pattern.permute.xlu0 0
    %120 = vperm.xlu0 %119, %v74
    %v121 = vpop.permute.xlu0 %120
    %124 = vset.pattern.permute.xlu0 0
    %125 = vperm.xlu0 %124, %v75
    %v126 = vpop.permute.xlu0 %125
    %129 = vset.pattern.permute.xlu0 0
    %130 = vperm.xlu0 %129, %v76
    %v131 = vpop.permute.xlu0 %130
    %134 = vset.pattern.permute.xlu0 0
    %135 = vperm.xlu0 %134, %v77
    %v136 = vpop.permute.xlu0 %135
    %139 = vset.pattern.permute.xlu0 0
    %140 = vperm.xlu0 %139, %v78
    %v141 = vpop.permute.xlu0 %140
    %144 = vset.pattern.permute.xlu0 0
    %145 = vperm.xlu0 %144, %v79
    %v146 = vpop.permute.xlu0 %145
    %149 = vset.pattern.permute.xlu0 0
    %150 = vperm.xlu0 %149, %v80
    %v151 = vpop.permute.xlu0 %150
    %154 = vset.pattern.permute.xlu0 0
    %155 = vperm.xlu0 %154, %v81
    %v156 = vpop.permute.xlu0 %155
    %159 = vset.pattern.permute.xlu0 0
    %160 = vperm.xlu0 %159, %v82
    %v161 = vpop.permute.xlu0 %160
    %vm163 = vcmask 195584
    %v165 = vsel %vm163, %v51, 0
    %v168 = vsel %vm163, %v52, 0
    %v171 = vsel %vm163, %v53, 0
    %v174 = vsel %vm163, %v54, 0
    %v177 = vsel %vm163, %v55, 0
    %v180 = vsel %vm163, %v56, 0
    %v183 = vsel %vm163, %v57, 0
    %v186 = vsel %vm163, %v58, 0
    %v189 = vsel %vm163, %v59, 0
    %v192 = vsel %vm163, %v60, 0
    %v195 = vsel %vm163, %v61, 0
    %v198 = vsel %vm163, %v62, 0
    %v201 = vsel %vm163, %v63, 0
    %v204 = vsel %vm163, %v64, 0
    %v207 = vsel %vm163, %v65, 0
    %v210 = vsel %vm163, %v66, 0
    %212 = vmatprep.subr.mxu0 0.0
    %213 = vmatpush1.msra.mxu0 %v47
    %214 = vmatprep.subr.mxu0 0.0
    %215 = vmatpush1.msra.mxu0 %v48
    %216 = vmatprep.subr.mxu0 0.0
    %217 = vmatpush1.msra.mxu0 %v49
    %218 = vmatprep.subr.mxu0 0.0
    %219 = vmatpush1.msra.mxu0 0.0
    %220 = vmatprep.subr.mxu0 0.0
    %221 = vmatpush1.msra.mxu0 0.0
    %222 = vmatprep.subr.mxu0 0.0
    %223 = vmatpush1.msra.mxu0 0.0
    %224 = vmatprep.subr.mxu0 0.0
    %225 = vmatpush1.msra.mxu0 0.0
    %226 = vmatprep.subr.mxu0 0.0
    %227 = vmatpush1.msra.mxu0 0.0
    %228 = vmatprep.subr.mxu0 0.0
    %229 = vmatpush1.msra.mxu0 0.0
    %230 = vmatprep.subr.mxu0 0.0
    %231 = vmatpush1.msra.mxu0 0.0
    %232 = vmatprep.subr.mxu0 0.0
    %233 = vmatpush1.msra.mxu0 0.0
    %234 = vmatprep.subr.mxu0 0.0
    %235 = vmatpush1.msra.mxu0 0.0
    %236 = vmatprep.subr.mxu0 0.0
    %237 = vmatpush1.msra.mxu0 0.0
    %238 = vmatprep.subr.mxu0 0.0
    %239 = vmatpush1.msra.mxu0 0.0
    %240 = vmatprep.subr.mxu0 0.0
    %241 = vmatpush1.msra.mxu0 0.0
    %242 = vmatprep.subr.mxu0 0.0
    %243 = vmatpush1.msra.mxu0 0.0
    %244 = vmatprep.subr.mxu0 0.0
    %245 = vmatpush1.msra.mxu0 0.0
    %246 = vmatprep.subr.mxu0 0.0
    %247 = vmatpush1.msra.mxu0 0.0
    %248 = vmatprep.subr.mxu0 0.0
    %249 = vmatpush1.msra.mxu0 0.0
    %250 = vmatprep.subr.mxu0 0.0
    %251 = vmatpush1.msra.mxu0 0.0
    %252 = vmatprep.subr.mxu0 0.0
    %253 = vmatpush1.msra.mxu0 0.0
    %254 = vmatprep.subr.mxu0 0.0
    %255 = vmatpush1.msra.mxu0 0.0
    %256 = vmatprep.subr.mxu0 0.0
    %257 = vmatpush1.msra.mxu0 0.0
    %258 = vmatprep.subr.mxu0 0.0
    %259 = vmatpush1.msra.mxu0 0.0
    %260 = vmatprep.subr.mxu0 0.0
    %261 = vmatpush1.msra.mxu0 0.0
    %262 = vmatprep.subr.mxu0 0.0
    %263 = vmatpush1.msra.mxu0 0.0
    %264 = vmatprep.subr.mxu0 0.0
    %265 = vmatpush1.msra.mxu0 0.0
    %266 = vmatprep.subr.mxu0 0.0
    %267 = vmatpush1.msra.mxu0 0.0
    %268 = vmatprep.subr.mxu0 0.0
    %269 = vmatpush1.msra.mxu0 0.0
    %270 = vmatprep.subr.mxu0 0.0
    %271 = vmatpush1.msra.mxu0 0.0
    %272 = vmatprep.subr.mxu0 0.0
    %273 = vmatpush1.msra.mxu0 0.0
    %274 = vmatprep.subr.mxu0 0.0
    %275 = vmatpush1.msra.mxu0 0.0
    %276 = vmatprep.mubr.f32.mxu0 0.0
    %277 = vmatmul.mubr.f32.gmra.mrb[0].mxu0 %v165
    %v278 = vpop.f32.mrb[0].mxu0
    %v279 = vadd.f32 %v86, %v278
    %v280 = vpop.f32.mrb[0].mxu0
    %281 = vmatprep.mubr.f32.mxu0 0.0
    %282 = vmatmul.mubr.f32.gmra.mrb[0].mxu0 %v168
    %v283 = vpop.f32.mrb[0].mxu0
    %v284 = vadd.f32 %v91, %v283
    %v285 = vpop.f32.mrb[0].mxu0
    %286 = vmatprep.mubr.f32.mxu0 0.0
    %287 = vmatmul.mubr.f32.gmra.mrb[0].mxu0 %v171
    %v288 = vpop.f32.mrb[0].mxu0
    %v289 = vadd.f32 %v96, %v288
    %v290 = vpop.f32.mrb[0].mxu0
    %291 = vmatprep.mubr.f32.mxu0 0.0
    %292 = vmatmul.mubr.f32.gmra.mrb[0].mxu0 %v174
    %v293 = vpop.f32.mrb[0].mxu0
    %v294 = vadd.f32 %v101, %v293
    %v295 = vpop.f32.mrb[0].mxu0
    %296 = vmatprep.mubr.f32.mxu0 0.0
    %297 = vmatmul.mubr.f32.gmra.mrb[0].mxu0 %v177
    %v298 = vpop.f32.mrb[0].mxu0
    %v299 = vadd.f32 %v106, %v298
    %v300 = vpop.f32.mrb[0].mxu0
    %301 = vmatprep.mubr.f32.mxu0 0.0
    %302 = vmatmul.mubr.f32.gmra.mrb[0].mxu0 %v180
    %v303 = vpop.f32.mrb[0].mxu0
    %v304 = vadd.f32 %v111, %v303
    %v305 = vpop.f32.mrb[0].mxu0
    %306 = vmatprep.mubr.f32.mxu0 0.0
    %307 = vmatmul.mubr.f32.gmra.mrb[0].mxu0 %v183
    %v308 = vpop.f32.mrb[0].mxu0
    %v309 = vadd.f32 %v116, %v308
    %v310 = vpop.f32.mrb[0].mxu0
    %311 = vmatprep.mubr.f32.mxu0 0.0
    %312 = vmatmul.mubr.f32.gmra.mrb[0].mxu0 %v186
    %v313 = vpop.f32.mrb[0].mxu0
    %v314 = vadd.f32 %v121, %v313
    %v315 = vpop.f32.mrb[0].mxu0
    %316 = vmatprep.mubr.f32.mxu0 0.0
    %317 = vmatmul.mubr.f32.gmra.mrb[0].mxu0 %v189
    %v318 = vpop.f32.mrb[0].mxu0
    %v319 = vadd.f32 %v126, %v318
    %v320 = vpop.f32.mrb[0].mxu0
    %321 = vmatprep.mubr.f32.mxu0 0.0
    %322 = vmatmul.mubr.f32.gmra.mrb[0].mxu0 %v192
    %v323 = vpop.f32.mrb[0].mxu0
    %v324 = vadd.f32 %v131, %v323
    %v325 = vpop.f32.mrb[0].mxu0
    %326 = vmatprep.mubr.f32.mxu0 0.0
    %327 = vmatmul.mubr.f32.gmra.mrb[0].mxu0 %v195
    %v328 = vpop.f32.mrb[0].mxu0
    %v329 = vadd.f32 %v136, %v328
    %v330 = vpop.f32.mrb[0].mxu0
    %331 = vmatprep.mubr.f32.mxu0 0.0
    %332 = vmatmul.mubr.f32.gmra.mrb[0].mxu0 %v198
    %v333 = vpop.f32.mrb[0].mxu0
    %v334 = vadd.f32 %v141, %v333
    %v335 = vpop.f32.mrb[0].mxu0
    %336 = vmatprep.mubr.f32.mxu0 0.0
    %337 = vmatmul.mubr.f32.gmra.mrb[0].mxu0 %v201
    %v338 = vpop.f32.mrb[0].mxu0
    %v339 = vadd.f32 %v146, %v338
    %v340 = vpop.f32.mrb[0].mxu0
    %341 = vmatprep.mubr.f32.mxu0 0.0
    %342 = vmatmul.mubr.f32.gmra.mrb[0].mxu0 %v204
    %v343 = vpop.f32.mrb[0].mxu0
    %v344 = vadd.f32 %v151, %v343
    %v345 = vpop.f32.mrb[0].mxu0
    %346 = vmatprep.mubr.f32.mxu0 0.0
    %347 = vmatmul.mubr.f32.gmra.mrb[0].mxu0 %v207
    %v348 = vpop.f32.mrb[0].mxu0
    %v349 = vadd.f32 %v156, %v348
    %v350 = vpop.f32.mrb[0].mxu0
    %351 = vmatprep.mubr.f32.mxu0 0.0
    %352 = vmatmul.mubr.f32.gmra.mrb[0].mxu0 %v210
    %v353 = vpop.f32.mrb[0].mxu0
    %v354 = vadd.f32 %v161, %v353
    %v355 = vpop.f32.mrb[0].mxu0
    %356 = vdwg.mxu0
    %v357 = vmax.f32 %v279, 0.0
    %v358 = vmax.f32 %v284, 0.0
    %v359 = vmax.f32 %v289, 0.0
    %v360 = vmax.f32 %v294, 0.0
    %v361 = vmax.f32 %v299, 0.0
    %v362 = vmax.f32 %v304, 0.0
    %v363 = vmax.f32 %v309, 0.0
    %v364 = vmax.f32 %v314, 0.0
    %v365 = vmax.f32 %v319, 0.0
    %v366 = vmax.f32 %v324, 0.0
    %v367 = vmax.f32 %v329, 0.0
    %v368 = vmax.f32 %v334, 0.0
    %v369 = vmax.f32 %v339, 0.0
    %v370 = vmax.f32 %v344, 0.0
    %v371 = vmax.f32 %v349, 0.0
    %v372 = vmax.f32 %v354, 0.0
    %v373 = vld [vmem:[%s4] sm:$0xff]
    %v374 = vld [vmem:[%s4 + $0x8] sm:$0xff]
    %v375 = vld [vmem:[%s4 + $0x10] sm:$0xff]
    %v376 = vld [vmem:[%s4 + $0x18] sm:$0xff]
    %v377 = vld [vmem:[%s4 + $0x20] sm:$0xff]
    %v378 = vld [vmem:[%s4 + $0x28] sm:$0xff]
    %v379 = vld [vmem:[%s4 + $0x30] sm:$0xff]
    %v380 = vld [vmem:[%s4 + $0x38] sm:$0xff]
    %v381 = vld [vmem:[%s4 + $0x40] sm:$0xff]
    %v382 = vld [vmem:[%s4 + $0x48] sm:$0xff]
    %v383 = vld [vmem:[%s4 + $0x50] sm:$0xff]
    %v384 = vld [vmem:[%s4 + $0x58] sm:$0xff]
    %v385 = vld [vmem:[%s4 + $0x60] sm:$0xff]
    %v386 = vld [vmem:[%s4 + $0x68] sm:$0xff]
    %v387 = vld [vmem:[%s4 + $0x70] sm:$0xff]
    %v388 = vld [vmem:[%s4 + $0x78] sm:$0xff]
    %v389 = vld [vmem:[%s5] sm:$0xff]
    %v390 = vld [vmem:[%s5 + $0x8] sm:$0xff]
    %v391 = vld [vmem:[%s5 + $0x10] sm:$0xff]
    %v392 = vld [vmem:[%s5 + $0x18] sm:$0xff]
    %v393 = vld [vmem:[%s5 + $0x20] sm:$0xff]
    %v394 = vld [vmem:[%s5 + $0x28] sm:$0xff]
    %v395 = vld [vmem:[%s5 + $0x30] sm:$0xff]
    %v396 = vld [vmem:[%s5 + $0x38] sm:$0xff]
    %v397 = vld [vmem:[%s5 + $0x40] sm:$0xff]
    %v398 = vld [vmem:[%s5 + $0x48] sm:$0xff]
    %v399 = vld [vmem:[%s5 + $0x50] sm:$0xff]
    %v400 = vld [vmem:[%s5 + $0x58] sm:$0xff]
    %v401 = vld [vmem:[%s5 + $0x60] sm:$0xff]
    %v402 = vld [vmem:[%s5 + $0x68] sm:$0xff]
    %v403 = vld [vmem:[%s5 + $0x70] sm:$0xff]
    %v404 = vld [vmem:[%s5 + $0x78] sm:$0xff]
    %406 = vset.pattern.permute.xlu0 0
    %407 = vperm.xlu0 %406, %v389
    %v408 = vpop.permute.xlu0 %407
    %411 = vset.pattern.permute.xlu0 0
    %412 = vperm.xlu0 %411, %v390
    %v413 = vpop.permute.xlu0 %412
    %416 = vset.pattern.permute.xlu0 0
    %417 = vperm.xlu0 %416, %v391
    %v418 = vpop.permute.xlu0 %417
    %421 = vset.pattern.permute.xlu0 0
    %422 = vperm.xlu0 %421, %v392
    %v423 = vpop.permute.xlu0 %422
    %426 = vset.pattern.permute.xlu0 0
    %427 = vperm.xlu0 %426, %v393
    %v428 = vpop.permute.xlu0 %427
    %431 = vset.pattern.permute.xlu0 0
    %432 = vperm.xlu0 %431, %v394
    %v433 = vpop.permute.xlu0 %432
    %436 = vset.pattern.permute.xlu0 0
    %437 = vperm.xlu0 %436, %v395
    %v438 = vpop.permute.xlu0 %437
    %441 = vset.pattern.permute.xlu0 0
    %442 = vperm.xlu0 %441, %v396
    %v443 = vpop.permute.xlu0 %442
    %446 = vset.pattern.permute.xlu0 0
    %447 = vperm.xlu0 %446, %v397
    %v448 = vpop.permute.xlu0 %447
    %451 = vset.pattern.permute.xlu0 0
    %452 = vperm.xlu0 %451, %v398
    %v453 = vpop.permute.xlu0 %452
    %456 = vset.pattern.permute.xlu0 0
    %457 = vperm.xlu0 %456, %v399
    %v458 = vpop.permute.xlu0 %457
    %461 = vset.pattern.permute.xlu0 0
    %462 = vperm.xlu0 %461, %v400
    %v463 = vpop.permute.xlu0 %462
    %466 = vset.pattern.permute.xlu0 0
    %467 = vperm.xlu0 %466, %v401
    %v468 = vpop.permute.xlu0 %467
    %471 = vset.pattern.permute.xlu0 0
    %472 = vperm.xlu0 %471, %v402
    %v473 = vpop.permute.xlu0 %472
    %476 = vset.pattern.permute.xlu0 0
    %477 = vperm.xlu0 %476, %v403
    %v478 = vpop.permute.xlu0 %477
    %481 = vset.pattern.permute.xlu0 0
    %482 = vperm.xlu0 %481, %v404
    %v483 = vpop.permute.xlu0 %482
    %485 = vmatprep.subr.mxu0 0.0
    %486 = vmatpush1.msra.mxu0 %v357
    %487 = vmatprep.subr.mxu0 0.0
    %488 = vmatpush1.msra.mxu0 %v358
    %489 = vmatprep.subr.mxu0 0.0
    %490 = vmatpush1.msra.mxu0 %v359
    %491 = vmatprep.subr.mxu0 0.0
    %492 = vmatpush1.msra.mxu0 %v360
    %493 = vmatprep.subr.mxu0 0.0
    %494 = vmatpush1.msra.mxu0 %v361
    %495 = vmatprep.subr.mxu0 0.0
    %496 = vmatpush1.msra.mxu0 %v362
    %497 = vmatprep.subr.mxu0 0.0
    %498 = vmatpush1.msra.mxu0 %v363
    %499 = vmatprep.subr.mxu0 0.0
    %500 = vmatpush1.msra.mxu0 %v364
    %501 = vmatprep.subr.mxu0 0.0
    %502 = vmatpush1.msra.mxu0 %v365
    %503 = vmatprep.subr.mxu0 0.0
    %504 = vmatpush1.msra.mxu0 %v366
    %505 = vmatprep.subr.mxu0 0.0
    %506 = vmatpush1.msra.mxu0 %v367
    %507 = vmatprep.subr.mxu0 0.0
    %508 = vmatpush1.msra.mxu0 %v368
    %509 = vmatprep.subr.mxu0 0.0
    %510 = vmatpush1.msra.mxu0 %v369
    %511 = vmatprep.subr.mxu0 0.0
    %512 = vmatpush1.msra.mxu0 %v370
    %513 = vmatprep.subr.mxu0 0.0
    %514 = vmatpush1.msra.mxu0 %v371
    %515 = vmatprep.subr.mxu0 0.0
    %516 = vmatpush1.msra.mxu0 %v372
    %517 = vmatprep.subr.mxu0 0.0
    %518 = vmatpush1.msra.mxu0 0.0
    %519 = vmatprep.subr.mxu0 0.0
    %520 = vmatpush1.msra.mxu0 0.0
    %521 = vmatprep.subr.mxu0 0.0
    %522 = vmatpush1.msra.mxu0 0.0
    %523 = vmatprep.subr.mxu0 0.0
    %524 = vmatpush1.msra.mxu0 0.0
    %525 = vmatprep.subr.mxu0 0.0
    %526 = vmatpush1.msra.mxu0 0.0
    %527 = vmatprep.subr.mxu0 0.0
    %528 = vmatpush1.msra.mxu0 0.0
    %529 = vmatprep.subr.mxu0 0.0
    %530 = vmatpush1.msra.mxu0 0.0
    %531 = vmatprep.subr.mxu0 0.0
    %532 = vmatpush1.msra.mxu0 0.0
    %533 = vmatprep.subr.mxu0 0.0
    %534 = vmatpush1.msra.mxu0 0.0
    %535 = vmatprep.subr.mxu0 0.0
    %536 = vmatpush1.msra.mxu0 0.0
    %537 = vmatprep.subr.mxu0 0.0
    %538 = vmatpush1.msra.mxu0 0.0
    %539 = vmatprep.subr.mxu0 0.0
    %540 = vmatpush1.msra.mxu0 0.0
    %541 = vmatprep.subr.mxu0 0.0
    %542 = vmatpush1.msra.mxu0 0.0
    %543 = vmatprep.subr.mxu0 0.0
    %544 = vmatpush1.msra.mxu0 0.0
    %545 = vmatprep.subr.mxu0 0.0
    %546 = vmatpush1.msra.mxu0 0.0
    %547 = vmatprep.subr.mxu0 0.0
    %548 = vmatpush1.msra.mxu0 0.0
    %549 = vmatprep.mubr.f32.mxu0 0.0
    %550 = vmatmul.mubr.f32.gmra.mrb[0].mxu0 %v373
    %v551 = vpop.f32.mrb[0].mxu0
    %v552 = vadd.f32 %v408, %v551
    %v553 = vpop.f32.mrb[0].mxu0
    %554 = vmatprep.mubr.f32.mxu0 0.0
    %555 = vmatmul.mubr.f32.gmra.mrb[0].mxu0 %v374
    %v556 = vpop.f32.mrb[0].mxu0
    %v557 = vadd.f32 %v413, %v556
    %v558 = vpop.f32.mrb[0].mxu0
    %559 = vmatprep.mubr.f32.mxu0 0.0
    %560 = vmatmul.mubr.f32.gmra.mrb[0].mxu0 %v375
    %v561 = vpop.f32.mrb[0].mxu0
    %v562 = vadd.f32 %v418, %v561
    %v563 = vpop.f32.mrb[0].mxu0
    %564 = vmatprep.mubr.f32.mxu0 0.0
    %565 = vmatmul.mubr.f32.gmra.mrb[0].mxu0 %v376
    %v566 = vpop.f32.mrb[0].mxu0
    %v567 = vadd.f32 %v423, %v566
    %v568 = vpop.f32.mrb[0].mxu0
    %569 = vmatprep.mubr.f32.mxu0 0.0
    %570 = vmatmul.mubr.f32.gmra.mrb[0].mxu0 %v377
    %v571 = vpop.f32.mrb[0].mxu0
    %v572 = vadd.f32 %v428, %v571
    %v573 = vpop.f32.mrb[0].mxu0
    %574 = vmatprep.mubr.f32.mxu0 0.0
    %575 = vmatmul.mubr.f32.gmra.mrb[0].mxu0 %v378
    %v576 = vpop.f32.mrb[0].mxu0
    %v577 = vadd.f32 %v433, %v576
    %v578 = vpop.f32.mrb[0].mxu0
    %579 = vmatprep.mubr.f32.mxu0 0.0
    %580 = vmatmul.mubr.f32.gmra.mrb[0].mxu0 %v379
    %v581 = vpop.f32.mrb[0].mxu0
    %v582 = vadd.f32 %v438, %v581
    %v583 = vpop.f32.mrb[0].mxu0
    %584 = vmatprep.mubr.f32.mxu0 0.0
    %585 = vmatmul.mubr.f32.gmra.mrb[0].mxu0 %v380
    %v586 = vpop.f32.mrb[0].mxu0
    %v587 = vadd.f32 %v443, %v586
    %v588 = vpop.f32.mrb[0].mxu0
    %589 = vmatprep.mubr.f32.mxu0 0.0
    %590 = vmatmul.mubr.f32.gmra.mrb[0].mxu0 %v381
    %v591 = vpop.f32.mrb[0].mxu0
    %v592 = vadd.f32 %v448, %v591
    %v593 = vpop.f32.mrb[0].mxu0
    %594 = vmatprep.mubr.f32.mxu0 0.0
    %595 = vmatmul.mubr.f32.gmra.mrb[0].mxu0 %v382
    %v596 = vpop.f32.mrb[0].mxu0
    %v597 = vadd.f32 %v453, %v596
    %v598 = vpop.f32.mrb[0].mxu0
    %599 = vmatprep.mubr.f32.mxu0 0.0
    %600 = vmatmul.mubr.f32.gmra.mrb[0].mxu0 %v383
    %v601 = vpop.f32.mrb[0].mxu0
    %v602 = vadd.f32 %v458, %v601
    %v603 = vpop.f32.mrb[0].mxu0
    %604 = vmatprep.mubr.f32.mxu0 0.0
    %605 = vmatmul.mubr.f32.gmra.mrb[0].mxu0 %v384
    %v606 = vpop.f32.mrb[0].mxu0
    %v607 = vadd.f32 %v463, %v606
    %v608 = vpop.f32.mrb[0].mxu0
    %609 = vmatprep.mubr.f32.mxu0 0.0
    %610 = vmatmul.mubr.f32.gmra.mrb[0].mxu0 %v385
    %v611 = vpop.f32.mrb[0].mxu0
    %v612 = vadd.f32 %v468, %v611
    %v613 = vpop.f32.mrb[0].mxu0
    %614 = vmatprep.mubr.f32.mxu0 0.0
    %615 = vmatmul.mubr.f32.gmra.mrb[0].mxu0 %v386
    %v616 = vpop.f32.mrb[0].mxu0
    %v617 = vadd.f32 %v473, %v616
    %v618 = vpop.f32.mrb[0].mxu0
    %619 = vmatprep.mubr.f32.mxu0 0.0
    %620 = vmatmul.mubr.f32.gmra.mrb[0].mxu0 %v387
    %v621 = vpop.f32.mrb[0].mxu0
    %v622 = vadd.f32 %v478, %v621
    %v623 = vpop.f32.mrb[0].mxu0
    %624 = vmatprep.mubr.f32.mxu0 0.0
    %625 = vmatmul.mubr.f32.gmra.mrb[0].mxu0 %v388
    %v626 = vpop.f32.mrb[0].mxu0
    %v627 = vadd.f32 %v483, %v626
    %v628 = vpop.f32.mrb[0].mxu0
    %629 = vdwg.mxu0
    %v630 = vmax.f32 %v552, 0.0
    %v631 = vmax.f32 %v557, 0.0
    %v632 = vmax.f32 %v562, 0.0
    %v633 = vmax.f32 %v567, 0.0
    %v634 = vmax.f32 %v572, 0.0
    %v635 = vmax.f32 %v577, 0.0
    %v636 = vmax.f32 %v582, 0.0
    %v637 = vmax.f32 %v587, 0.0
    %v638 = vmax.f32 %v592, 0.0
    %v639 = vmax.f32 %v597, 0.0
    %v640 = vmax.f32 %v602, 0.0
    %v641 = vmax.f32 %v607, 0.0
    %v642 = vmax.f32 %v612, 0.0
    %v643 = vmax.f32 %v617, 0.0
    %v644 = vmax.f32 %v622, 0.0
    %v645 = vmax.f32 %v627, 0.0
    %v646 = vld [vmem:[%s6] sm:$0xff]
    %v647 = vld [vmem:[%s6 + $0x8] sm:$0xff]
    %v648 = vld [vmem:[%s6 + $0x10] sm:$0xff]
    %v649 = vld [vmem:[%s6 + $0x18] sm:$0xff]
    %v650 = vld [vmem:[%s6 + $0x20] sm:$0xff]
    %v651 = vld [vmem:[%s6 + $0x28] sm:$0xff]
    %v652 = vld [vmem:[%s6 + $0x30] sm:$0xff]
    %v653 = vld [vmem:[%s6 + $0x38] sm:$0xff]
    %v654 = vld [vmem:[%s6 + $0x40] sm:$0xff]
    %v655 = vld [vmem:[%s6 + $0x48] sm:$0xff]
    %v656 = vld [vmem:[%s6 + $0x50] sm:$0xff]
    %v657 = vld [vmem:[%s6 + $0x58] sm:$0xff]
    %v658 = vld [vmem:[%s6 + $0x60] sm:$0xff]
    %v659 = vld [vmem:[%s6 + $0x68] sm:$0xff]
    %v660 = vld [vmem:[%s6 + $0x70] sm:$0xff]
    %v661 = vld [vmem:[%s6 + $0x78] sm:$0xff]
    %v662 = vld [vmem:[%s7] sm:$0xff]
    %v663 = vld [vmem:[%s7 + $0x8] sm:$0xff]
    %v664 = vld [vmem:[%s7 + $0x10] sm:$0xff]
    %v665 = vld [vmem:[%s7 + $0x18] sm:$0xff]
    %v666 = vld [vmem:[%s7 + $0x20] sm:$0xff]
    %v667 = vld [vmem:[%s7 + $0x28] sm:$0xff]
    %v668 = vld [vmem:[%s7 + $0x30] sm:$0xff]
    %v669 = vld [vmem:[%s7 + $0x38] sm:$0xff]
    %v670 = vld [vmem:[%s7 + $0x40] sm:$0xff]
    %v671 = vld [vmem:[%s7 + $0x48] sm:$0xff]
    %v672 = vld [vmem:[%s7 + $0x50] sm:$0xff]
    %v673 = vld [vmem:[%s7 + $0x58] sm:$0xff]
    %v674 = vld [vmem:[%s7 + $0x60] sm:$0xff]
    %v675 = vld [vmem:[%s7 + $0x68] sm:$0xff]
    %v676 = vld [vmem:[%s7 + $0x70] sm:$0xff]
    %v677 = vld [vmem:[%s7 + $0x78] sm:$0xff]
    %679 = vset.pattern.permute.xlu0 0
    %680 = vperm.xlu0 %679, %v662
    %v681 = vpop.permute.xlu0 %680
    %684 = vset.pattern.permute.xlu0 0
    %685 = vperm.xlu0 %684, %v663
    %v686 = vpop.permute.xlu0 %685
    %689 = vset.pattern.permute.xlu0 0
    %690 = vperm.xlu0 %689, %v664
    %v691 = vpop.permute.xlu0 %690
    %694 = vset.pattern.permute.xlu0 0
    %695 = vperm.xlu0 %694, %v665
    %v696 = vpop.permute.xlu0 %695
    %699 = vset.pattern.permute.xlu0 0
    %700 = vperm.xlu0 %699, %v666
    %v701 = vpop.permute.xlu0 %700
    %704 = vset.pattern.permute.xlu0 0
    %705 = vperm.xlu0 %704, %v667
    %v706 = vpop.permute.xlu0 %705
    %709 = vset.pattern.permute.xlu0 0
    %710 = vperm.xlu0 %709, %v668
    %v711 = vpop.permute.xlu0 %710
    %714 = vset.pattern.permute.xlu0 0
    %715 = vperm.xlu0 %714, %v669
    %v716 = vpop.permute.xlu0 %715
    %719 = vset.pattern.permute.xlu0 0
    %720 = vperm.xlu0 %719, %v670
    %v721 = vpop.permute.xlu0 %720
    %724 = vset.pattern.permute.xlu0 0
    %725 = vperm.xlu0 %724, %v671
    %v726 = vpop.permute.xlu0 %725
    %729 = vset.pattern.permute.xlu0 0
    %730 = vperm.xlu0 %729, %v672
    %v731 = vpop.permute.xlu0 %730
    %734 = vset.pattern.permute.xlu0 0
    %735 = vperm.xlu0 %734, %v673
    %v736 = vpop.permute.xlu0 %735
    %739 = vset.pattern.permute.xlu0 0
    %740 = vperm.xlu0 %739, %v674
    %v741 = vpop.permute.xlu0 %740
    %744 = vset.pattern.permute.xlu0 0
    %745 = vperm.xlu0 %744, %v675
    %v746 = vpop.permute.xlu0 %745
    %749 = vset.pattern.permute.xlu0 0
    %750 = vperm.xlu0 %749, %v676
    %v751 = vpop.permute.xlu0 %750
    %754 = vset.pattern.permute.xlu0 0
    %755 = vperm.xlu0 %754, %v677
    %v756 = vpop.permute.xlu0 %755
    %v758 = vlaneseq
    %v759 = vshrl.u32 %v758, 7
    %v760 = vsub.s32 0, %v759
    %v761 = vrot.slane %v50, %v760
    %v762 = vmul.f32 %v681, %v761
    %v763 = vmul.f32 %v686, %v761
    %v764 = vmul.f32 %v691, %v761
    %v765 = vmul.f32 %v696, %v761
    %v766 = vmul.f32 %v701, %v761
    %v767 = vmul.f32 %v706, %v761
    %v768 = vmul.f32 %v711, %v761
    %v769 = vmul.f32 %v716, %v761
    %v770 = vmul.f32 %v721, %v761
    %v771 = vmul.f32 %v726, %v761
    %v772 = vmul.f32 %v731, %v761
    %v773 = vmul.f32 %v736, %v761
    %v774 = vmul.f32 %v741, %v761
    %v775 = vmul.f32 %v746, %v761
    %v776 = vmul.f32 %v751, %v761
    %v777 = vmul.f32 %v756, %v761
    %778 = vmatprep.subr.mxu0 0.0
    %779 = vmatpush1.msra.mxu0 %v630
    %780 = vmatprep.subr.mxu0 0.0
    %781 = vmatpush1.msra.mxu0 %v631
    %782 = vmatprep.subr.mxu0 0.0
    %783 = vmatpush1.msra.mxu0 %v632
    %784 = vmatprep.subr.mxu0 0.0
    %785 = vmatpush1.msra.mxu0 %v633
    %786 = vmatprep.subr.mxu0 0.0
    %787 = vmatpush1.msra.mxu0 %v634
    %788 = vmatprep.subr.mxu0 0.0
    %789 = vmatpush1.msra.mxu0 %v635
    %790 = vmatprep.subr.mxu0 0.0
    %791 = vmatpush1.msra.mxu0 %v636
    %792 = vmatprep.subr.mxu0 0.0
    %793 = vmatpush1.msra.mxu0 %v637
    %794 = vmatprep.subr.mxu0 0.0
    %795 = vmatpush1.msra.mxu0 %v638
    %796 = vmatprep.subr.mxu0 0.0
    %797 = vmatpush1.msra.mxu0 %v639
    %798 = vmatprep.subr.mxu0 0.0
    %799 = vmatpush1.msra.mxu0 %v640
    %800 = vmatprep.subr.mxu0 0.0
    %801 = vmatpush1.msra.mxu0 %v641
    %802 = vmatprep.subr.mxu0 0.0
    %803 = vmatpush1.msra.mxu0 %v642
    %804 = vmatprep.subr.mxu0 0.0
    %805 = vmatpush1.msra.mxu0 %v643
    %806 = vmatprep.subr.mxu0 0.0
    %807 = vmatpush1.msra.mxu0 %v644
    %808 = vmatprep.subr.mxu0 0.0
    %809 = vmatpush1.msra.mxu0 %v645
    %810 = vmatprep.subr.mxu0 0.0
    %811 = vmatpush1.msra.mxu0 0.0
    %812 = vmatprep.subr.mxu0 0.0
    %813 = vmatpush1.msra.mxu0 0.0
    %814 = vmatprep.subr.mxu0 0.0
    %815 = vmatpush1.msra.mxu0 0.0
    %816 = vmatprep.subr.mxu0 0.0
    %817 = vmatpush1.msra.mxu0 0.0
    %818 = vmatprep.subr.mxu0 0.0
    %819 = vmatpush1.msra.mxu0 0.0
    %820 = vmatprep.subr.mxu0 0.0
    %821 = vmatpush1.msra.mxu0 0.0
    %822 = vmatprep.subr.mxu0 0.0
    %823 = vmatpush1.msra.mxu0 0.0
    %824 = vmatprep.subr.mxu0 0.0
    %825 = vmatpush1.msra.mxu0 0.0
    %826 = vmatprep.subr.mxu0 0.0
    %827 = vmatpush1.msra.mxu0 0.0
    %828 = vmatprep.subr.mxu0 0.0
    %829 = vmatpush1.msra.mxu0 0.0
    %830 = vmatprep.subr.mxu0 0.0
    %831 = vmatpush1.msra.mxu0 0.0
    %832 = vmatprep.subr.mxu0 0.0
    %833 = vmatpush1.msra.mxu0 0.0
    %834 = vmatprep.subr.mxu0 0.0
    %835 = vmatpush1.msra.mxu0 0.0
    %836 = vmatprep.subr.mxu0 0.0
    %837 = vmatpush1.msra.mxu0 0.0
    %838 = vmatprep.subr.mxu0 0.0
    %839 = vmatpush1.msra.mxu0 0.0
    %840 = vmatprep.subr.mxu0 0.0
    %841 = vmatpush1.msra.mxu0 0.0
    %842 = vmatprep.mubr.f32.mxu0 0.0
    %843 = vmatmul.mubr.f32.gmra.mrb[0].mxu0 %v646
    %v844 = vpop.f32.mrb[0].mxu0
    %v845 = vadd.f32 %v762, %v844
    %v846 = vpop.f32.mrb[0].mxu0
    %847 = vmatprep.mubr.f32.mxu0 0.0
    %848 = vmatmul.mubr.f32.gmra.mrb[0].mxu0 %v647
    %v849 = vpop.f32.mrb[0].mxu0
    %v850 = vadd.f32 %v763, %v849
    %v851 = vpop.f32.mrb[0].mxu0
    %852 = vmatprep.mubr.f32.mxu0 0.0
    %853 = vmatmul.mubr.f32.gmra.mrb[0].mxu0 %v648
    %v854 = vpop.f32.mrb[0].mxu0
    %v855 = vadd.f32 %v764, %v854
    %v856 = vpop.f32.mrb[0].mxu0
    %857 = vmatprep.mubr.f32.mxu0 0.0
    %858 = vmatmul.mubr.f32.gmra.mrb[0].mxu0 %v649
    %v859 = vpop.f32.mrb[0].mxu0
    %v860 = vadd.f32 %v765, %v859
    %v861 = vpop.f32.mrb[0].mxu0
    %862 = vmatprep.mubr.f32.mxu0 0.0
    %863 = vmatmul.mubr.f32.gmra.mrb[0].mxu0 %v650
    %v864 = vpop.f32.mrb[0].mxu0
    %v865 = vadd.f32 %v766, %v864
    %v866 = vpop.f32.mrb[0].mxu0
    %867 = vmatprep.mubr.f32.mxu0 0.0
    %868 = vmatmul.mubr.f32.gmra.mrb[0].mxu0 %v651
    %v869 = vpop.f32.mrb[0].mxu0
    %v870 = vadd.f32 %v767, %v869
    %v871 = vpop.f32.mrb[0].mxu0
    %872 = vmatprep.mubr.f32.mxu0 0.0
    %873 = vmatmul.mubr.f32.gmra.mrb[0].mxu0 %v652
    %v874 = vpop.f32.mrb[0].mxu0
    %v875 = vadd.f32 %v768, %v874
    %v876 = vpop.f32.mrb[0].mxu0
    %877 = vmatprep.mubr.f32.mxu0 0.0
    %878 = vmatmul.mubr.f32.gmra.mrb[0].mxu0 %v653
    %v879 = vpop.f32.mrb[0].mxu0
    %v880 = vadd.f32 %v769, %v879
    %v881 = vpop.f32.mrb[0].mxu0
    %882 = vmatprep.mubr.f32.mxu0 0.0
    %883 = vmatmul.mubr.f32.gmra.mrb[0].mxu0 %v654
    %v884 = vpop.f32.mrb[0].mxu0
    %v885 = vadd.f32 %v770, %v884
    %v886 = vpop.f32.mrb[0].mxu0
    %887 = vmatprep.mubr.f32.mxu0 0.0
    %888 = vmatmul.mubr.f32.gmra.mrb[0].mxu0 %v655
    %v889 = vpop.f32.mrb[0].mxu0
    %v890 = vadd.f32 %v771, %v889
    %v891 = vpop.f32.mrb[0].mxu0
    %892 = vmatprep.mubr.f32.mxu0 0.0
    %893 = vmatmul.mubr.f32.gmra.mrb[0].mxu0 %v656
    %v894 = vpop.f32.mrb[0].mxu0
    %v895 = vadd.f32 %v772, %v894
    %v896 = vpop.f32.mrb[0].mxu0
    %897 = vmatprep.mubr.f32.mxu0 0.0
    %898 = vmatmul.mubr.f32.gmra.mrb[0].mxu0 %v657
    %v899 = vpop.f32.mrb[0].mxu0
    %v900 = vadd.f32 %v773, %v899
    %v901 = vpop.f32.mrb[0].mxu0
    %902 = vmatprep.mubr.f32.mxu0 0.0
    %903 = vmatmul.mubr.f32.gmra.mrb[0].mxu0 %v658
    %v904 = vpop.f32.mrb[0].mxu0
    %v905 = vadd.f32 %v774, %v904
    %v906 = vpop.f32.mrb[0].mxu0
    %907 = vmatprep.mubr.f32.mxu0 0.0
    %908 = vmatmul.mubr.f32.gmra.mrb[0].mxu0 %v659
    %v909 = vpop.f32.mrb[0].mxu0
    %v910 = vadd.f32 %v775, %v909
    %v911 = vpop.f32.mrb[0].mxu0
    %912 = vmatprep.mubr.f32.mxu0 0.0
    %913 = vmatmul.mubr.f32.gmra.mrb[0].mxu0 %v660
    %v914 = vpop.f32.mrb[0].mxu0
    %v915 = vadd.f32 %v776, %v914
    %v916 = vpop.f32.mrb[0].mxu0
    %917 = vmatprep.mubr.f32.mxu0 0.0
    %918 = vmatmul.mubr.f32.gmra.mrb[0].mxu0 %v661
    %v919 = vpop.f32.mrb[0].mxu0
    %v920 = vadd.f32 %v777, %v919
    %v921 = vpop.f32.mrb[0].mxu0
    %922 = vdwg.mxu0
    %923 = vset.pattern.permute.xlu0 1
    %924 = vperm.xlu0 %923, %v662
    %v925 = vpop.permute.xlu0 %924
    %927 = vset.pattern.permute.xlu0 1
    %928 = vperm.xlu0 %927, %v663
    %v929 = vpop.permute.xlu0 %928
    %931 = vset.pattern.permute.xlu0 1
    %932 = vperm.xlu0 %931, %v664
    %v933 = vpop.permute.xlu0 %932
    %935 = vset.pattern.permute.xlu0 1
    %936 = vperm.xlu0 %935, %v665
    %v937 = vpop.permute.xlu0 %936
    %939 = vset.pattern.permute.xlu0 1
    %940 = vperm.xlu0 %939, %v666
    %v941 = vpop.permute.xlu0 %940
    %943 = vset.pattern.permute.xlu0 1
    %944 = vperm.xlu0 %943, %v667
    %v945 = vpop.permute.xlu0 %944
    %947 = vset.pattern.permute.xlu0 1
    %948 = vperm.xlu0 %947, %v668
    %v949 = vpop.permute.xlu0 %948
    %951 = vset.pattern.permute.xlu0 1
    %952 = vperm.xlu0 %951, %v669
    %v953 = vpop.permute.xlu0 %952
    %955 = vset.pattern.permute.xlu0 1
    %956 = vperm.xlu0 %955, %v670
    %v957 = vpop.permute.xlu0 %956
    %959 = vset.pattern.permute.xlu0 1
    %960 = vperm.xlu0 %959, %v671
    %v961 = vpop.permute.xlu0 %960
    %963 = vset.pattern.permute.xlu0 1
    %964 = vperm.xlu0 %963, %v672
    %v965 = vpop.permute.xlu0 %964
    %967 = vset.pattern.permute.xlu0 1
    %968 = vperm.xlu0 %967, %v673
    %v969 = vpop.permute.xlu0 %968
    %971 = vset.pattern.permute.xlu0 1
    %972 = vperm.xlu0 %971, %v674
    %v973 = vpop.permute.xlu0 %972
    %975 = vset.pattern.permute.xlu0 1
    %976 = vperm.xlu0 %975, %v675
    %v977 = vpop.permute.xlu0 %976
    %979 = vset.pattern.permute.xlu0 1
    %980 = vperm.xlu0 %979, %v676
    %v981 = vpop.permute.xlu0 %980
    %983 = vset.pattern.permute.xlu0 1
    %984 = vperm.xlu0 %983, %v677
    %v985 = vpop.permute.xlu0 %984
    %v987 = vlaneseq
    %v988 = vshrl.u32 %v987, 7
    %v989 = vsub.s32 1, %v988
    %v990 = vrot.slane %v50, %v989
    %v991 = vmul.f32 %v925, %v990
    %v992 = vmul.f32 %v929, %v990
    %v993 = vmul.f32 %v933, %v990
    %v994 = vmul.f32 %v937, %v990
    %v995 = vmul.f32 %v941, %v990
    %v996 = vmul.f32 %v945, %v990
    %v997 = vmul.f32 %v949, %v990
    %v998 = vmul.f32 %v953, %v990
    %v999 = vmul.f32 %v957, %v990
    %v1000 = vmul.f32 %v961, %v990
    %v1001 = vmul.f32 %v965, %v990
    %v1002 = vmul.f32 %v969, %v990
    %v1003 = vmul.f32 %v973, %v990
    %v1004 = vmul.f32 %v977, %v990
    %v1005 = vmul.f32 %v981, %v990
    %v1006 = vmul.f32 %v985, %v990
    %v1007 = vadd.f32 %v845, %v991
    %v1008 = vadd.f32 %v850, %v992
    %v1009 = vadd.f32 %v855, %v993
    %v1010 = vadd.f32 %v860, %v994
    %v1011 = vadd.f32 %v865, %v995
    %v1012 = vadd.f32 %v870, %v996
    %v1013 = vadd.f32 %v875, %v997
    %v1014 = vadd.f32 %v880, %v998
    %v1015 = vadd.f32 %v885, %v999
    %v1016 = vadd.f32 %v890, %v1000
    %v1017 = vadd.f32 %v895, %v1001
    %v1018 = vadd.f32 %v900, %v1002
    %v1019 = vadd.f32 %v905, %v1003
    %v1020 = vadd.f32 %v910, %v1004
    %v1021 = vadd.f32 %v915, %v1005
    %v1022 = vadd.f32 %v920, %v1006
    %v1023 = vld [vmem:[%s8] sm:$0xff]
    %v1024 = vld [vmem:[%s8 + $0x8] sm:$0xff]
    %v1025 = vld [vmem:[%s8 + $0x10] sm:$0xff]
    %v1026 = vld [vmem:[%s8 + $0x18] sm:$0xff]
    %v1027 = vld [vmem:[%s8 + $0x20] sm:$0xff]
    %v1028 = vld [vmem:[%s8 + $0x28] sm:$0xff]
    %v1029 = vld [vmem:[%s8 + $0x30] sm:$0xff]
    %v1030 = vld [vmem:[%s8 + $0x38] sm:$0xff]
    %v1031 = vld [vmem:[%s8 + $0x40] sm:$0xff]
    %v1032 = vld [vmem:[%s8 + $0x48] sm:$0xff]
    %v1033 = vld [vmem:[%s8 + $0x50] sm:$0xff]
    %v1034 = vld [vmem:[%s8 + $0x58] sm:$0xff]
    %v1035 = vld [vmem:[%s8 + $0x60] sm:$0xff]
    %v1036 = vld [vmem:[%s8 + $0x68] sm:$0xff]
    %v1037 = vld [vmem:[%s8 + $0x70] sm:$0xff]
    %v1038 = vld [vmem:[%s8 + $0x78] sm:$0xff]
    %1040 = vset.pattern.permute.xlu0 0
    %1041 = vperm.xlu0 %1040, %v1023
    %v1042 = vpop.permute.xlu0 %1041
    %1045 = vset.pattern.permute.xlu0 0
    %1046 = vperm.xlu0 %1045, %v1024
    %v1047 = vpop.permute.xlu0 %1046
    %1050 = vset.pattern.permute.xlu0 0
    %1051 = vperm.xlu0 %1050, %v1025
    %v1052 = vpop.permute.xlu0 %1051
    %1055 = vset.pattern.permute.xlu0 0
    %1056 = vperm.xlu0 %1055, %v1026
    %v1057 = vpop.permute.xlu0 %1056
    %1060 = vset.pattern.permute.xlu0 0
    %1061 = vperm.xlu0 %1060, %v1027
    %v1062 = vpop.permute.xlu0 %1061
    %1065 = vset.pattern.permute.xlu0 0
    %1066 = vperm.xlu0 %1065, %v1028
    %v1067 = vpop.permute.xlu0 %1066
    %1070 = vset.pattern.permute.xlu0 0
    %1071 = vperm.xlu0 %1070, %v1029
    %v1072 = vpop.permute.xlu0 %1071
    %1075 = vset.pattern.permute.xlu0 0
    %1076 = vperm.xlu0 %1075, %v1030
    %v1077 = vpop.permute.xlu0 %1076
    %1080 = vset.pattern.permute.xlu0 0
    %1081 = vperm.xlu0 %1080, %v1031
    %v1082 = vpop.permute.xlu0 %1081
    %1085 = vset.pattern.permute.xlu0 0
    %1086 = vperm.xlu0 %1085, %v1032
    %v1087 = vpop.permute.xlu0 %1086
    %1090 = vset.pattern.permute.xlu0 0
    %1091 = vperm.xlu0 %1090, %v1033
    %v1092 = vpop.permute.xlu0 %1091
    %1095 = vset.pattern.permute.xlu0 0
    %1096 = vperm.xlu0 %1095, %v1034
    %v1097 = vpop.permute.xlu0 %1096
    %1100 = vset.pattern.permute.xlu0 0
    %1101 = vperm.xlu0 %1100, %v1035
    %v1102 = vpop.permute.xlu0 %1101
    %1105 = vset.pattern.permute.xlu0 0
    %1106 = vperm.xlu0 %1105, %v1036
    %v1107 = vpop.permute.xlu0 %1106
    %1110 = vset.pattern.permute.xlu0 0
    %1111 = vperm.xlu0 %1110, %v1037
    %v1112 = vpop.permute.xlu0 %1111
    %1115 = vset.pattern.permute.xlu0 0
    %1116 = vperm.xlu0 %1115, %v1038
    %v1117 = vpop.permute.xlu0 %1116
    %v1119 = vadd.f32 %v1007, %v1042
    %v1120 = vadd.f32 %v1008, %v1047
    %v1121 = vadd.f32 %v1009, %v1052
    %v1122 = vadd.f32 %v1010, %v1057
    %v1123 = vadd.f32 %v1011, %v1062
    %v1124 = vadd.f32 %v1012, %v1067
    %v1125 = vadd.f32 %v1013, %v1072
    %v1126 = vadd.f32 %v1014, %v1077
    %v1127 = vadd.f32 %v1015, %v1082
    %v1128 = vadd.f32 %v1016, %v1087
    %v1129 = vadd.f32 %v1017, %v1092
    %v1130 = vadd.f32 %v1018, %v1097
    %v1131 = vadd.f32 %v1019, %v1102
    %v1132 = vadd.f32 %v1020, %v1107
    %v1133 = vadd.f32 %v1021, %v1112
    %v1134 = vadd.f32 %v1022, %v1117
    %v1135 = vmax.f32 %v1119, 0.0
    %v1136 = vmax.f32 %v1120, 0.0
    %v1137 = vmax.f32 %v1121, 0.0
    %v1138 = vmax.f32 %v1122, 0.0
    %v1139 = vmax.f32 %v1123, 0.0
    %v1140 = vmax.f32 %v1124, 0.0
    %v1141 = vmax.f32 %v1125, 0.0
    %v1142 = vmax.f32 %v1126, 0.0
    %v1143 = vmax.f32 %v1127, 0.0
    %v1144 = vmax.f32 %v1128, 0.0
    %v1145 = vmax.f32 %v1129, 0.0
    %v1146 = vmax.f32 %v1130, 0.0
    %v1147 = vmax.f32 %v1131, 0.0
    %v1148 = vmax.f32 %v1132, 0.0
    %v1149 = vmax.f32 %v1133, 0.0
    %v1150 = vmax.f32 %v1134, 0.0
    %v1151 = vld [vmem:[%s9] sm:$0xff]
    %v1152 = vld [vmem:[%s9 + $0x8] sm:$0xff]
    %v1153 = vld [vmem:[%s9 + $0x10] sm:$0xff]
    %v1154 = vld [vmem:[%s9 + $0x18] sm:$0xff]
    %v1155 = vld [vmem:[%s9 + $0x20] sm:$0xff]
    %v1156 = vld [vmem:[%s9 + $0x28] sm:$0xff]
    %v1157 = vld [vmem:[%s9 + $0x30] sm:$0xff]
    %v1158 = vld [vmem:[%s9 + $0x38] sm:$0xff]
    %v1159 = vld [vmem:[%s9 + $0x40] sm:$0xff]
    %v1160 = vld [vmem:[%s9 + $0x48] sm:$0xff]
    %v1161 = vld [vmem:[%s9 + $0x50] sm:$0xff]
    %v1162 = vld [vmem:[%s9 + $0x58] sm:$0xff]
    %v1163 = vld [vmem:[%s9 + $0x60] sm:$0xff]
    %v1164 = vld [vmem:[%s9 + $0x68] sm:$0xff]
    %v1165 = vld [vmem:[%s9 + $0x70] sm:$0xff]
    %v1166 = vld [vmem:[%s9 + $0x78] sm:$0xff]
    %v1167 = vld [vmem:[%s10] sm:$0xff]
    %v1168 = vld [vmem:[%s10 + $0x8] sm:$0xff]
    %v1169 = vld [vmem:[%s10 + $0x10] sm:$0xff]
    %v1170 = vld [vmem:[%s10 + $0x18] sm:$0xff]
    %v1171 = vld [vmem:[%s10 + $0x20] sm:$0xff]
    %v1172 = vld [vmem:[%s10 + $0x28] sm:$0xff]
    %v1173 = vld [vmem:[%s10 + $0x30] sm:$0xff]
    %v1174 = vld [vmem:[%s10 + $0x38] sm:$0xff]
    %v1175 = vld [vmem:[%s10 + $0x40] sm:$0xff]
    %v1176 = vld [vmem:[%s10 + $0x48] sm:$0xff]
    %v1177 = vld [vmem:[%s10 + $0x50] sm:$0xff]
    %v1178 = vld [vmem:[%s10 + $0x58] sm:$0xff]
    %v1179 = vld [vmem:[%s10 + $0x60] sm:$0xff]
    %v1180 = vld [vmem:[%s10 + $0x68] sm:$0xff]
    %v1181 = vld [vmem:[%s10 + $0x70] sm:$0xff]
    %v1182 = vld [vmem:[%s10 + $0x78] sm:$0xff]
    %1184 = vset.pattern.permute.xlu0 0
    %1185 = vperm.xlu0 %1184, %v1167
    %v1186 = vpop.permute.xlu0 %1185
    %1189 = vset.pattern.permute.xlu0 0
    %1190 = vperm.xlu0 %1189, %v1168
    %v1191 = vpop.permute.xlu0 %1190
    %1194 = vset.pattern.permute.xlu0 0
    %1195 = vperm.xlu0 %1194, %v1169
    %v1196 = vpop.permute.xlu0 %1195
    %1199 = vset.pattern.permute.xlu0 0
    %1200 = vperm.xlu0 %1199, %v1170
    %v1201 = vpop.permute.xlu0 %1200
    %1204 = vset.pattern.permute.xlu0 0
    %1205 = vperm.xlu0 %1204, %v1171
    %v1206 = vpop.permute.xlu0 %1205
    %1209 = vset.pattern.permute.xlu0 0
    %1210 = vperm.xlu0 %1209, %v1172
    %v1211 = vpop.permute.xlu0 %1210
    %1214 = vset.pattern.permute.xlu0 0
    %1215 = vperm.xlu0 %1214, %v1173
    %v1216 = vpop.permute.xlu0 %1215
    %1219 = vset.pattern.permute.xlu0 0
    %1220 = vperm.xlu0 %1219, %v1174
    %v1221 = vpop.permute.xlu0 %1220
    %1224 = vset.pattern.permute.xlu0 0
    %1225 = vperm.xlu0 %1224, %v1175
    %v1226 = vpop.permute.xlu0 %1225
    %1229 = vset.pattern.permute.xlu0 0
    %1230 = vperm.xlu0 %1229, %v1176
    %v1231 = vpop.permute.xlu0 %1230
    %1234 = vset.pattern.permute.xlu0 0
    %1235 = vperm.xlu0 %1234, %v1177
    %v1236 = vpop.permute.xlu0 %1235
    %1239 = vset.pattern.permute.xlu0 0
    %1240 = vperm.xlu0 %1239, %v1178
    %v1241 = vpop.permute.xlu0 %1240
    %1244 = vset.pattern.permute.xlu0 0
    %1245 = vperm.xlu0 %1244, %v1179
    %v1246 = vpop.permute.xlu0 %1245
    %1249 = vset.pattern.permute.xlu0 0
    %1250 = vperm.xlu0 %1249, %v1180
    %v1251 = vpop.permute.xlu0 %1250
    %1254 = vset.pattern.permute.xlu0 0
    %1255 = vperm.xlu0 %1254, %v1181
    %v1256 = vpop.permute.xlu0 %1255
    %1259 = vset.pattern.permute.xlu0 0
    %1260 = vperm.xlu0 %1259, %v1182
    %v1261 = vpop.permute.xlu0 %1260
    %1263 = vmatprep.subr.mxu0 0.0
    %1264 = vmatpush1.msra.mxu0 %v1135
    %1265 = vmatprep.subr.mxu0 0.0
    %1266 = vmatpush1.msra.mxu0 %v1136
    %1267 = vmatprep.subr.mxu0 0.0
    %1268 = vmatpush1.msra.mxu0 %v1137
    %1269 = vmatprep.subr.mxu0 0.0
    %1270 = vmatpush1.msra.mxu0 %v1138
    %1271 = vmatprep.subr.mxu0 0.0
    %1272 = vmatpush1.msra.mxu0 %v1139
    %1273 = vmatprep.subr.mxu0 0.0
    %1274 = vmatpush1.msra.mxu0 %v1140
    %1275 = vmatprep.subr.mxu0 0.0
    %1276 = vmatpush1.msra.mxu0 %v1141
    %1277 = vmatprep.subr.mxu0 0.0
    %1278 = vmatpush1.msra.mxu0 %v1142
    %1279 = vmatprep.subr.mxu0 0.0
    %1280 = vmatpush1.msra.mxu0 %v1143
    %1281 = vmatprep.subr.mxu0 0.0
    %1282 = vmatpush1.msra.mxu0 %v1144
    %1283 = vmatprep.subr.mxu0 0.0
    %1284 = vmatpush1.msra.mxu0 %v1145
    %1285 = vmatprep.subr.mxu0 0.0
    %1286 = vmatpush1.msra.mxu0 %v1146
    %1287 = vmatprep.subr.mxu0 0.0
    %1288 = vmatpush1.msra.mxu0 %v1147
    %1289 = vmatprep.subr.mxu0 0.0
    %1290 = vmatpush1.msra.mxu0 %v1148
    %1291 = vmatprep.subr.mxu0 0.0
    %1292 = vmatpush1.msra.mxu0 %v1149
    %1293 = vmatprep.subr.mxu0 0.0
    %1294 = vmatpush1.msra.mxu0 %v1150
    %1295 = vmatprep.subr.mxu0 0.0
    %1296 = vmatpush1.msra.mxu0 0.0
    %1297 = vmatprep.subr.mxu0 0.0
    %1298 = vmatpush1.msra.mxu0 0.0
    %1299 = vmatprep.subr.mxu0 0.0
    %1300 = vmatpush1.msra.mxu0 0.0
    %1301 = vmatprep.subr.mxu0 0.0
    %1302 = vmatpush1.msra.mxu0 0.0
    %1303 = vmatprep.subr.mxu0 0.0
    %1304 = vmatpush1.msra.mxu0 0.0
    %1305 = vmatprep.subr.mxu0 0.0
    %1306 = vmatpush1.msra.mxu0 0.0
    %1307 = vmatprep.subr.mxu0 0.0
    %1308 = vmatpush1.msra.mxu0 0.0
    %1309 = vmatprep.subr.mxu0 0.0
    %1310 = vmatpush1.msra.mxu0 0.0
    %1311 = vmatprep.subr.mxu0 0.0
    %1312 = vmatpush1.msra.mxu0 0.0
    %1313 = vmatprep.subr.mxu0 0.0
    %1314 = vmatpush1.msra.mxu0 0.0
    %1315 = vmatprep.subr.mxu0 0.0
    %1316 = vmatpush1.msra.mxu0 0.0
    %1317 = vmatprep.subr.mxu0 0.0
    %1318 = vmatpush1.msra.mxu0 0.0
    %1319 = vmatprep.subr.mxu0 0.0
    %1320 = vmatpush1.msra.mxu0 0.0
    %1321 = vmatprep.subr.mxu0 0.0
    %1322 = vmatpush1.msra.mxu0 0.0
    %1323 = vmatprep.subr.mxu0 0.0
    %1324 = vmatpush1.msra.mxu0 0.0
    %1325 = vmatprep.subr.mxu0 0.0
    %1326 = vmatpush1.msra.mxu0 0.0
    %1327 = vmatprep.mubr.f32.mxu0 0.0
    %1328 = vmatmul.mubr.f32.gmra.mrb[0].mxu0 %v1151
    %v1329 = vpop.f32.mrb[0].mxu0
    %v1330 = vadd.f32 %v1186, %v1329
    %v1331 = vpop.f32.mrb[0].mxu0
    %1332 = vmatprep.mubr.f32.mxu0 0.0
    %1333 = vmatmul.mubr.f32.gmra.mrb[0].mxu0 %v1152
    %v1334 = vpop.f32.mrb[0].mxu0
    %v1335 = vadd.f32 %v1191, %v1334
    %v1336 = vpop.f32.mrb[0].mxu0
    %1337 = vmatprep.mubr.f32.mxu0 0.0
    %1338 = vmatmul.mubr.f32.gmra.mrb[0].mxu0 %v1153
    %v1339 = vpop.f32.mrb[0].mxu0
    %v1340 = vadd.f32 %v1196, %v1339
    %v1341 = vpop.f32.mrb[0].mxu0
    %1342 = vmatprep.mubr.f32.mxu0 0.0
    %1343 = vmatmul.mubr.f32.gmra.mrb[0].mxu0 %v1154
    %v1344 = vpop.f32.mrb[0].mxu0
    %v1345 = vadd.f32 %v1201, %v1344
    %v1346 = vpop.f32.mrb[0].mxu0
    %1347 = vmatprep.mubr.f32.mxu0 0.0
    %1348 = vmatmul.mubr.f32.gmra.mrb[0].mxu0 %v1155
    %v1349 = vpop.f32.mrb[0].mxu0
    %v1350 = vadd.f32 %v1206, %v1349
    %v1351 = vpop.f32.mrb[0].mxu0
    %1352 = vmatprep.mubr.f32.mxu0 0.0
    %1353 = vmatmul.mubr.f32.gmra.mrb[0].mxu0 %v1156
    %v1354 = vpop.f32.mrb[0].mxu0
    %v1355 = vadd.f32 %v1211, %v1354
    %v1356 = vpop.f32.mrb[0].mxu0
    %1357 = vmatprep.mubr.f32.mxu0 0.0
    %1358 = vmatmul.mubr.f32.gmra.mrb[0].mxu0 %v1157
    %v1359 = vpop.f32.mrb[0].mxu0
    %v1360 = vadd.f32 %v1216, %v1359
    %v1361 = vpop.f32.mrb[0].mxu0
    %1362 = vmatprep.mubr.f32.mxu0 0.0
    %1363 = vmatmul.mubr.f32.gmra.mrb[0].mxu0 %v1158
    %v1364 = vpop.f32.mrb[0].mxu0
    %v1365 = vadd.f32 %v1221, %v1364
    %v1366 = vpop.f32.mrb[0].mxu0
    %1367 = vmatprep.mubr.f32.mxu0 0.0
    %1368 = vmatmul.mubr.f32.gmra.mrb[0].mxu0 %v1159
    %v1369 = vpop.f32.mrb[0].mxu0
    %v1370 = vadd.f32 %v1226, %v1369
    %v1371 = vpop.f32.mrb[0].mxu0
    %1372 = vmatprep.mubr.f32.mxu0 0.0
    %1373 = vmatmul.mubr.f32.gmra.mrb[0].mxu0 %v1160
    %v1374 = vpop.f32.mrb[0].mxu0
    %v1375 = vadd.f32 %v1231, %v1374
    %v1376 = vpop.f32.mrb[0].mxu0
    %1377 = vmatprep.mubr.f32.mxu0 0.0
    %1378 = vmatmul.mubr.f32.gmra.mrb[0].mxu0 %v1161
    %v1379 = vpop.f32.mrb[0].mxu0
    %v1380 = vadd.f32 %v1236, %v1379
    %v1381 = vpop.f32.mrb[0].mxu0
    %1382 = vmatprep.mubr.f32.mxu0 0.0
    %1383 = vmatmul.mubr.f32.gmra.mrb[0].mxu0 %v1162
    %v1384 = vpop.f32.mrb[0].mxu0
    %v1385 = vadd.f32 %v1241, %v1384
    %v1386 = vpop.f32.mrb[0].mxu0
    %1387 = vmatprep.mubr.f32.mxu0 0.0
    %1388 = vmatmul.mubr.f32.gmra.mrb[0].mxu0 %v1163
    %v1389 = vpop.f32.mrb[0].mxu0
    %v1390 = vadd.f32 %v1246, %v1389
    %v1391 = vpop.f32.mrb[0].mxu0
    %1392 = vmatprep.mubr.f32.mxu0 0.0
    %1393 = vmatmul.mubr.f32.gmra.mrb[0].mxu0 %v1164
    %v1394 = vpop.f32.mrb[0].mxu0
    %v1395 = vadd.f32 %v1251, %v1394
    %v1396 = vpop.f32.mrb[0].mxu0
    %1397 = vmatprep.mubr.f32.mxu0 0.0
    %1398 = vmatmul.mubr.f32.gmra.mrb[0].mxu0 %v1165
    %v1399 = vpop.f32.mrb[0].mxu0
    %v1400 = vadd.f32 %v1256, %v1399
    %v1401 = vpop.f32.mrb[0].mxu0
    %1402 = vmatprep.mubr.f32.mxu0 0.0
    %1403 = vmatmul.mubr.f32.gmra.mrb[0].mxu0 %v1166
    %v1404 = vpop.f32.mrb[0].mxu0
    %v1405 = vadd.f32 %v1261, %v1404
    %v1406 = vpop.f32.mrb[0].mxu0
    %1407 = vdwg.mxu0
    %v1408 = vmax.f32 %v1330, 0.0
    %v1409 = vmax.f32 %v1335, 0.0
    %v1410 = vmax.f32 %v1340, 0.0
    %v1411 = vmax.f32 %v1345, 0.0
    %v1412 = vmax.f32 %v1350, 0.0
    %v1413 = vmax.f32 %v1355, 0.0
    %v1414 = vmax.f32 %v1360, 0.0
    %v1415 = vmax.f32 %v1365, 0.0
    %v1416 = vmax.f32 %v1370, 0.0
    %v1417 = vmax.f32 %v1375, 0.0
    %v1418 = vmax.f32 %v1380, 0.0
    %v1419 = vmax.f32 %v1385, 0.0
    %v1420 = vmax.f32 %v1390, 0.0
    %v1421 = vmax.f32 %v1395, 0.0
    %v1422 = vmax.f32 %v1400, 0.0
    %v1423 = vmax.f32 %v1405, 0.0
    %v1424 = vld [vmem:[%s11] sm:$0xff]
    %v1425 = vld [vmem:[%s11 + $0x8] sm:$0xff]
    %v1426 = vld [vmem:[%s11 + $0x10] sm:$0xff]
    %v1427 = vld [vmem:[%s11 + $0x18] sm:$0xff]
    %v1428 = vld [vmem:[%s11 + $0x20] sm:$0xff]
    %v1429 = vld [vmem:[%s11 + $0x28] sm:$0xff]
    %v1430 = vld [vmem:[%s11 + $0x30] sm:$0xff]
    %v1431 = vld [vmem:[%s11 + $0x38] sm:$0xff]
    %v1432 = vld [vmem:[%s11 + $0x40] sm:$0xff]
    %v1433 = vld [vmem:[%s11 + $0x48] sm:$0xff]
    %v1434 = vld [vmem:[%s11 + $0x50] sm:$0xff]
    %v1435 = vld [vmem:[%s11 + $0x58] sm:$0xff]
    %v1436 = vld [vmem:[%s11 + $0x60] sm:$0xff]
    %v1437 = vld [vmem:[%s11 + $0x68] sm:$0xff]
    %v1438 = vld [vmem:[%s11 + $0x70] sm:$0xff]
    %v1439 = vld [vmem:[%s11 + $0x78] sm:$0xff]
    %v1440 = vld [vmem:[#allocation2] sm:$0x1]
    %1442 = vset.pattern.permute.xlu0 0
    %1443 = vperm.xlu0 %1442, %v1424
    %v1444 = vpop.permute.xlu0 %1443
    %1447 = vset.pattern.permute.xlu0 0
    %1448 = vperm.xlu0 %1447, %v1425
    %v1449 = vpop.permute.xlu0 %1448
    %1452 = vset.pattern.permute.xlu0 0
    %1453 = vperm.xlu0 %1452, %v1426
    %v1454 = vpop.permute.xlu0 %1453
    %1457 = vset.pattern.permute.xlu0 0
    %1458 = vperm.xlu0 %1457, %v1427
    %v1459 = vpop.permute.xlu0 %1458
    %1462 = vset.pattern.permute.xlu0 0
    %1463 = vperm.xlu0 %1462, %v1428
    %v1464 = vpop.permute.xlu0 %1463
    %1467 = vset.pattern.permute.xlu0 0
    %1468 = vperm.xlu0 %1467, %v1429
    %v1469 = vpop.permute.xlu0 %1468
    %1472 = vset.pattern.permute.xlu0 0
    %1473 = vperm.xlu0 %1472, %v1430
    %v1474 = vpop.permute.xlu0 %1473
    %1477 = vset.pattern.permute.xlu0 0
    %1478 = vperm.xlu0 %1477, %v1431
    %v1479 = vpop.permute.xlu0 %1478
    %1482 = vset.pattern.permute.xlu0 0
    %1483 = vperm.xlu0 %1482, %v1432
    %v1484 = vpop.permute.xlu0 %1483
    %1487 = vset.pattern.permute.xlu0 0
    %1488 = vperm.xlu0 %1487, %v1433
    %v1489 = vpop.permute.xlu0 %1488
    %1492 = vset.pattern.permute.xlu0 0
    %1493 = vperm.xlu0 %1492, %v1434
    %v1494 = vpop.permute.xlu0 %1493
    %1497 = vset.pattern.permute.xlu0 0
    %1498 = vperm.xlu0 %1497, %v1435
    %v1499 = vpop.permute.xlu0 %1498
    %1502 = vset.pattern.permute.xlu0 0
    %1503 = vperm.xlu0 %1502, %v1436
    %v1504 = vpop.permute.xlu0 %1503
    %1507 = vset.pattern.permute.xlu0 0
    %1508 = vperm.xlu0 %1507, %v1437
    %v1509 = vpop.permute.xlu0 %1508
    %1512 = vset.pattern.permute.xlu0 0
    %1513 = vperm.xlu0 %1512, %v1438
    %v1514 = vpop.permute.xlu0 %1513
    %1517 = vset.pattern.permute.xlu0 0
    %1518 = vperm.xlu0 %1517, %v1439
    %v1519 = vpop.permute.xlu0 %1518
    %v1521 = vmul.f32 %v1408, %v1444
    %v1522 = vmul.f32 %v1409, %v1449
    %v1523 = vmul.f32 %v1410, %v1454
    %v1524 = vmul.f32 %v1411, %v1459
    %v1525 = vmul.f32 %v1412, %v1464
    %v1526 = vmul.f32 %v1413, %v1469
    %v1527 = vmul.f32 %v1414, %v1474
    %v1528 = vmul.f32 %v1415, %v1479
    %v1529 = vmul.f32 %v1416, %v1484
    %v1530 = vmul.f32 %v1417, %v1489
    %v1531 = vmul.f32 %v1418, %v1494
    %v1532 = vmul.f32 %v1419, %v1499
    %v1533 = vmul.f32 %v1420, %v1504
    %v1534 = vmul.f32 %v1421, %v1509
    %v1535 = vmul.f32 %v1422, %v1514
    %v1536 = vmul.f32 %v1423, %v1519
    %v1537 = vadd.f32 %v1521, %v1522
    %v1538 = vadd.f32 %v1537, %v1523
    %v1539 = vadd.f32 %v1538, %v1524
    %v1540 = vadd.f32 %v1539, %v1525
    %v1541 = vadd.f32 %v1540, %v1526
    %v1542 = vadd.f32 %v1541, %v1527
    %v1543 = vadd.f32 %v1542, %v1528
    %v1544 = vadd.f32 %v1543, %v1529
    %v1545 = vadd.f32 %v1544, %v1530
    %v1546 = vadd.f32 %v1545, %v1531
    %v1547 = vadd.f32 %v1546, %v1532
    %v1548 = vadd.f32 %v1547, %v1533
    %v1549 = vadd.f32 %v1548, %v1534
    %v1550 = vadd.f32 %v1549, %v1535
    %v1551 = vadd.f32 %v1550, %v1536
    %v1552 = vrot.slane %v1551, 4
    %v1553 = vadd.f32 %v1551, %v1552
    %v1554 = vrot.slane %v1553, 2
    %v1555 = vadd.f32 %v1553, %v1554
    %v1556 = vrot.slane %v1555, 1
    %v1557 = vadd.f32 %v1555, %v1556
    %1559 = vset.pattern.permute.xlu0 0
    %1560 = vperm.xlu0 %1559, %v1440
    %v1561 = vpop.permute.xlu0 %1560
    %v1563 = vlaneseq
    %v1564 = vshrl.u32 %v1563, 7
    %v1565 = vsub.s32 0, %v1564
    %v1566 = vrot.slane %v1561, %v1565
    %v1567 = vadd.f32 %v1557, %v1566
    %1568 = vst [vmem:[#allocation3] sm:$0x1] %v1567
    // Predicated region
    $region54: #{tpu_custom_call.1} parent=1 // pred_check
      _
    $region55: #{tpu_custom_call.1} parent=1 // pred_check_branch
      %1570 = sbr.rel (0) target = $region57
    $region56: #{tpu_custom_call.1} parent=1 // pred_region
      %s1572 = ssub.s32 16, 16
      %1573 = vsyncadd [#allocation4], %s1572
      %s1575 = sshll.u32 [#allocation3], 4
      %s1576 = int_to_ptr.vmem [resolvable:$true] %s1575
      %1578 = dma.vmem_to_hbm [thread:$0]  %s1576, 16, %s13, [#allocation4]
    $region57: #{tpu_custom_call.1} parent=1 // pred_fallthru
      _
    // Predicated region
    $region58: #{tpu_custom_call.1} parent=1 // pred_check
      _
    $region59: #{tpu_custom_call.1} parent=1 // pred_check_branch
      %1580 = sbr.rel (0) target = $region61
    $region60: #{tpu_custom_call.1} parent=1 // pred_region
      %1581 = dma.done [#allocation4], 16
    $region61: #{tpu_custom_call.1} parent=1 // pred_fallthru
      _
    %1582 = vsyncpa [#allocation4], 1

</llo_original>
